<compile_context>
chip_gen: v7x
topology: tpu7x:2x2x1
jax: 0.10.0
libtpu: 0.0.40
codegen_flags: <defaults>
</compile_context>

<pallas_src>
import functools
import math

import jax
import jax.numpy as jnp
from jax.experimental import pallas as pl
from jax.experimental.pallas import tpu as pltpu

_LANES = 128


def _round_up(x, m):
    return (x + m - 1) // m * m


def _pad2(m, rows, cols):
    r, c = m.shape
    return jnp.pad(m, ((0, rows - r), (0, cols - c)))


def _vmem_limit_bytes(n, f_pad, e_pad, num_layers):
    """Scoped-VMEM request sized from the resident footprint, with headroom,
    clamped below the physical VMEM of the current chip."""
    bf16, f32 = 2, 4
    resident = (
        n * n * bf16                                # A_hat
        + n * f_pad * (bf16 + 3 * f32)              # h (bf16) + f32 temporaries
        + (num_layers + 2) * f_pad * f_pad * bf16   # layer + head weights
        + 2 * e_pad * n * bf16                      # bf16 one-hot gather operands
        + 2 * e_pad * f_pad * f32                   # gathered endpoint features
        + n * f_pad * bf16 + e_pad * f32            # outputs
        + 2 * e_pad * 4                             # edge indices
    )
    want = int(resident * 1.5) + (4 << 20)          # headroom for Mosaic temps
    try:
        info = pltpu.get_tpu_info()
        cap = int(getattr(info, "vmem_capacity_bytes", 0)) or (64 << 20)
    except Exception:                               # pragma: no cover
        cap = 64 << 20                              # conservative (v7x physical)
    return max(32 << 20, min(want, int(cap * 0.85)))


# ---------------------------------------------------------------------------
# Fused Pallas kernel
# ---------------------------------------------------------------------------

def _wingnn_kernel(*refs, num_layers, dim_out):
    """Fused WinGNN forward.

        for each layer:   h = relu((A_hat @ h) @ W_l)         (bf16 MXU, f32 acc)
        emb   = l2_normalize(h)                                (f32, rsqrt on EUP)
        hid   = relu(emb @ W1^T)
        preds = sigmoid(hid @ W2^T)                            (padded cols masked)
        pred[e] = sum_f preds[src[e], f] * preds[dst[e], f]    (bf16 one-hot MXU
                                                                gather, std (M,K)x(K,N))
    """
    a_ref, x_ref = refs[0], refs[1]
    w_refs = refs[2:2 + num_layers]
    w1t_ref, w2t_ref, src_ref, dst_ref = refs[2 + num_layers:6 + num_layers]
    emb_ref, pred_ref = refs[6 + num_layers], refs[7 + num_layers]

    n = a_ref.shape[0]
    e_pad = src_ref.shape[0]

    # ---- GNN message passing: h = relu((A_hat @ h) @ W_l) ----------------
    h = x_ref[...]                                    # (N, Fpad) bf16
    for li in range(num_layers):
        t = jnp.dot(a_ref[...], h, preferred_element_type=jnp.float32)
        z = jnp.dot(t.astype(jnp.bfloat16), w_refs[li][...],
                    preferred_element_type=jnp.float32)
        h = jnp.maximum(z, 0.0).astype(jnp.bfloat16)  # relu in f32 -> bf16 for MXU

    # ---- F.normalize: L2 over features, eps=1e-12 clamp on the norm ------
    xf = h.astype(jnp.float32)
    ssq = jnp.sum(xf * xf, axis=-1, keepdims=True)
    inv = jax.lax.rsqrt(jnp.maximum(ssq, 1e-24))      # == 1 / max(||x||, 1e-12)
    xn = xf * inv
    emb_ref[...] = xn.astype(emb_ref.dtype)           # bf16 writeback; wrapper slices

    # ---- head: dropout(id) -> linear -> relu -> dropout(id) -> linear -> sigmoid
    hid = jnp.dot(xn.astype(jnp.bfloat16), w1t_ref[...],
                  preferred_element_type=jnp.float32)
    hid = jnp.maximum(hid, 0.0)
    logits = jnp.dot(hid.astype(jnp.bfloat16), w2t_ref[...],
                     preferred_element_type=jnp.float32)
    preds = jax.nn.sigmoid(logits)                    # (N, Fpad) f32
    # zero padded output columns (would otherwise be sigmoid(0) = 0.5 and
    # contaminate the dot decode); then drop to bf16 only for the MXU gather.
    col = jax.lax.broadcasted_iota(jnp.int32, preds.shape, 1)
    preds_b = jnp.where(col < dim_out, preds, 0.0).astype(jnp.bfloat16)

    # ---- edge gather via bf16 one-hot MXU matmuls, standard orientation --
    # oh_*[e, n] = 1 iff node n is the src/dst endpoint of edge e.  Padded
    # edges carry index == N (out of range) -> all-zero rows -> pred == 0.
    node_iota = jax.lax.broadcasted_iota(jnp.int32, (e_pad, n), 1)
    oh_src = (node_iota == src_ref[...]).astype(jnp.bfloat16)   # (E_pad, N)
    oh_dst = (node_iota == dst_ref[...]).astype(jnp.bfloat16)
    g_src = jnp.dot(oh_src, preds_b, preferred_element_type=jnp.float32)  # (E_pad, Fpad)
    g_dst = jnp.dot(oh_dst, preds_b, preferred_element_type=jnp.float32)
    pred_ref[...] = jnp.sum(g_src * g_dst, axis=-1,
                            keepdims=True).astype(pred_ref.dtype)         # (E_pad, 1)


# ---------------------------------------------------------------------------
# Wrapper: hoistable graph/weight prep + jitted per-snapshot forward
# ---------------------------------------------------------------------------

def make_wingnn_forward(a_hat, gnn_weights, weight1, weight2):
    """Pads/casts the graph and weights ONCE (they are reused across WinGNN
    window steps) and returns a jitted forward(x, edge_label_index)."""
    n = a_hat.shape[0]
    dim_in = gnn_weights[0].shape[0]
    gnn_dim_out = gnn_weights[0].shape[1]
    hidden_dim = weight1.shape[0]
    dim_out = weight2.shape[0]
    num_layers = len(gnn_weights)

    f_pad = _round_up(max(dim_in, gnn_dim_out, hidden_dim, dim_out), _LANES)

    # bf16 MXU operands; accumulation stays f32 inside the kernel.
    a_b = a_hat.astype(jnp.bfloat16)                                   # (N, N)
    w_b = tuple(_pad2(w, f_pad, f_pad).astype(jnp.bfloat16) for w in gnn_weights)
    w1t = _pad2(weight1.T, f_pad, f_pad).astype(jnp.bfloat16)          # F.linear: x @ W1^T
    w2t = _pad2(weight2.T, f_pad, f_pad).astype(jnp.bfloat16)          # F.linear: h @ W2^T

    kernel = functools.partial(_wingnn_kernel, num_layers=num_layers,
                               dim_out=dim_out)
    vmem = pl.BlockSpec(memory_space=pltpu.MemorySpace.VMEM)
    n_in = 6 + num_layers

    @jax.jit
    def forward(x, edge_label_index):
        e = edge_label_index.shape[1]
        e_pad = _round_up(max(e, _LANES), _LANES)

        x_b = _pad2(x, n, f_pad).astype(jnp.bfloat16)
        # Padded edge slots get index N (out of range) so they decode to 0.
        src = jnp.pad(edge_label_index[0].astype(jnp.int32), (0, e_pad - e),
                      constant_values=n).reshape(e_pad, 1)
        dst = jnp.pad(edge_label_index[1].astype(jnp.int32), (0, e_pad - e),
                      constant_values=n).reshape(e_pad, 1)

        emb_pad, pred_pad = pl.pallas_call(
            kernel,
            out_shape=(jax.ShapeDtypeStruct((n, f_pad), jnp.bfloat16),  # node_embedding
                       jax.ShapeDtypeStruct((e_pad, 1), jnp.float32)),  # edge decode
            in_specs=[vmem] * n_in,
            out_specs=(vmem, vmem),
            compiler_params=pltpu.CompilerParams(
                vmem_limit_bytes=_vmem_limit_bytes(n, f_pad, e_pad, num_layers)),
        )(a_b, x_b, *w_b, w1t, w2t, src, dst)

        node_embedding = emb_pad[:, :gnn_dim_out].astype(jnp.float32)
        pred = pred_pad[:e, 0]
        return pred, node_embedding

    return forward


def wingnn_forward(a_hat, x, gnn_weights, weight1, weight2, edge_label_index):
    """One-shot convenience wrapper (prep + forward)."""
    return make_wingnn_forward(a_hat, gnn_weights, weight1, weight2)(
        x, edge_label_index)


# ---------------------------------------------------------------------------
# Pure-JAX reference (f32) for correctness
# ---------------------------------------------------------------------------

def wingnn_reference(a_hat, x, gnn_weights, weight1, weight2, edge_label_index):
    h = x
    for w in gnn_weights:
        h = jax.nn.relu((a_hat @ h) @ w)
    norm = jnp.sqrt(jnp.sum(h * h, axis=-1, keepdims=True))
    emb = h / jnp.maximum(norm, 1e-12)
    hid = jax.nn.relu(emb @ weight1.T)
    preds = jax.nn.sigmoid(hid @ weight2.T)
    v1 = preds[edge_label_index[0]]
    v2 = preds[edge_label_index[1]]
    return jnp.sum(v1 * v2, axis=-1), emb


# ---------------------------------------------------------------------------
# Deterministic parameter / input construction
# ---------------------------------------------------------------------------

def xavier_normal(key, shape, gain):
    fan_out, fan_in = shape  # nn.Parameter(torch.ones(out, in)) convention
    std = gain * math.sqrt(2.0 / (fan_in + fan_out))
    return std * jax.random.normal(key, shape, dtype=jnp.float32)


if __name__ == "__main__":
    # "cfg" values (synthetic, small):
    NUM_LAYERS = 2        # cfg.gnn.layers_mp
    DIM_IN = 16           # dim_in
    GNN_DIM_OUT = 32      # cfg.gnn.dim_out
    HIDDEN_DIM = 32       # cfg.gnn.hidden_dim
    DIM_OUT = 32          # dim_out (module arg)
    N = 64                # number of nodes
    E = 16                # number of labeled edges

    key = jax.random.PRNGKey(0)
    k_x, k_adj, k_ei, k_w1, k_w2, *k_gnn = jax.random.split(key, 5 + NUM_LAYERS)

    # Node features.
    x = jax.random.normal(k_x, (N, DIM_IN), dtype=jnp.float32)

    # Random symmetric adjacency with self-loops, symmetric normalization.
    a_rand = jax.random.bernoulli(k_adj, p=0.1, shape=(N, N)).astype(jnp.float32)
    a = jnp.maximum(a_rand, a_rand.T)
    a = jnp.maximum(a, jnp.eye(N, dtype=jnp.float32))      # add self loops
    deg = jnp.sum(a, axis=1)
    d_inv_sqrt = 1.0 / jnp.sqrt(deg)
    a_hat = a * d_inv_sqrt[:, None] * d_inv_sqrt[None, :]

    # Per-layer GCN projection weights (Xavier-normal, relu gain).
    gain = math.sqrt(2.0)
    gnn_weights = []
    for i in range(NUM_LAYERS):
        d_in = DIM_IN if i == 0 else GNN_DIM_OUT
        w = xavier_normal(k_gnn[i], (GNN_DIM_OUT, d_in), gain).T  # (d_in, GNN_DIM_OUT)
        gnn_weights.append(w)

    # Head weights (match reset_parameters: xavier_normal_ with relu gain).
    weight1 = xavier_normal(k_w1, (HIDDEN_DIM, GNN_DIM_OUT), gain)
    weight2 = xavier_normal(k_w2, (DIM_OUT, HIDDEN_DIM), gain)

    # Labeled edges.
    edge_label_index = jax.random.randint(k_ei, (2, E), 0, N, dtype=jnp.int32)

    # Prep (graph + weights padded/cast once), then the jitted forward.
    forward = make_wingnn_forward(a_hat, gnn_weights, weight1, weight2)
    pred, node_embedding = forward(x, edge_label_index)
    jax.block_until_ready((pred, node_embedding))

    assert pred.shape == (E,)
    assert node_embedding.shape == (N, GNN_DIM_OUT)
    assert bool(jnp.all(jnp.isfinite(pred)))
    assert bool(jnp.all(jnp.isfinite(node_embedding)))

    # Correctness vs. pure-JAX f32 reference (loose tolerance: MXU path is bf16).
    pred_ref, emb_ref = wingnn_reference(a_hat, x, gnn_weights, weight1, weight2,
                                         edge_label_index)
    assert bool(jnp.allclose(pred, pred_ref, rtol=5e-2, atol=5e-2)), (
        float(jnp.max(jnp.abs(pred - pred_ref))))
    assert bool(jnp.allclose(node_embedding, emb_ref, rtol=5e-2, atol=5e-2)), (
        float(jnp.max(jnp.abs(node_embedding - emb_ref))))

    print("KERNEL_OK")
</pallas_src>

<mosaic_0001>
module attributes {stable_mosaic.version = 11 : i64} {
  func.func @_wingnn_kernel(%arg0: memref<64x64xbf16, #tpu.memory_space<vmem>>, %arg1: memref<64x128xbf16, #tpu.memory_space<vmem>>, %arg2: memref<128x128xbf16, #tpu.memory_space<vmem>>, %arg3: memref<128x128xbf16, #tpu.memory_space<vmem>>, %arg4: memref<128x128xbf16, #tpu.memory_space<vmem>>, %arg5: memref<128x128xbf16, #tpu.memory_space<vmem>>, %arg6: memref<128x1xi32, #tpu.memory_space<vmem>>, %arg7: memref<128x1xi32, #tpu.memory_space<vmem>>, %arg8: memref<64x128xbf16, #tpu.memory_space<vmem>>, %arg9: memref<128x1xf32, #tpu.memory_space<vmem>>) attributes {dimension_semantics = [], scalar_prefetch = 0 : i64, scratch_operands = 0 : i64, tpu.core_type = #tpu.core_type<tc>} {
    %c0 = arith.constant 0 : index
    %c0_0 = arith.constant 0 : index
    %0 = vector.load %arg1[%c0, %c0_0] : memref<64x128xbf16, #tpu.memory_space<vmem>>, vector<64x128xbf16>
    %c0_1 = arith.constant 0 : index
    %c0_2 = arith.constant 0 : index
    %1 = vector.load %arg0[%c0_1, %c0_2] : memref<64x64xbf16, #tpu.memory_space<vmem>>, vector<64x64xbf16>
    %cst = arith.constant dense<0.000000e+00> : vector<64x128xf32>
    %2 = tpu.matmul %1, %0, %cst {dimension_numbers = #tpu.dot_dimension_numbers<[1], [0], [0], [1], [0, 0, 1, 1], [], []>} : vector<64x64xbf16>, vector<64x128xbf16>, vector<64x128xf32> -> vector<64x128xf32>
    %3 = arith.truncf %2 : vector<64x128xf32> to vector<64x128xbf16>
    %c0_3 = arith.constant 0 : index
    %c0_4 = arith.constant 0 : index
    %4 = vector.load %arg2[%c0_3, %c0_4] : memref<128x128xbf16, #tpu.memory_space<vmem>>, vector<128x128xbf16>
    %cst_5 = arith.constant dense<0.000000e+00> : vector<64x128xf32>
    %5 = tpu.matmul %3, %4, %cst_5 {dimension_numbers = #tpu.dot_dimension_numbers<[1], [0], [0], [1], [0, 0, 1, 1], [], []>} : vector<64x128xbf16>, vector<128x128xbf16>, vector<64x128xf32> -> vector<64x128xf32>
    %cst_6 = arith.constant 0.000000e+00 : f32
    %6 = vector.broadcast %cst_6 : f32 to vector<64x128xf32>
    %7 = arith.maximumf %5, %6 : vector<64x128xf32>
    %8 = arith.truncf %7 : vector<64x128xf32> to vector<64x128xbf16>
    %c0_7 = arith.constant 0 : index
    %c0_8 = arith.constant 0 : index
    %9 = vector.load %arg0[%c0_7, %c0_8] : memref<64x64xbf16, #tpu.memory_space<vmem>>, vector<64x64xbf16>
    %cst_9 = arith.constant dense<0.000000e+00> : vector<64x128xf32>
    %10 = tpu.matmul %9, %8, %cst_9 {dimension_numbers = #tpu.dot_dimension_numbers<[1], [0], [0], [1], [0, 0, 1, 1], [], []>} : vector<64x64xbf16>, vector<64x128xbf16>, vector<64x128xf32> -> vector<64x128xf32>
    %11 = arith.truncf %10 : vector<64x128xf32> to vector<64x128xbf16>
    %c0_10 = arith.constant 0 : index
    %c0_11 = arith.constant 0 : index
    %12 = vector.load %arg3[%c0_10, %c0_11] : memref<128x128xbf16, #tpu.memory_space<vmem>>, vector<128x128xbf16>
    %cst_12 = arith.constant dense<0.000000e+00> : vector<64x128xf32>
    %13 = tpu.matmul %11, %12, %cst_12 {dimension_numbers = #tpu.dot_dimension_numbers<[1], [0], [0], [1], [0, 0, 1, 1], [], []>} : vector<64x128xbf16>, vector<128x128xbf16>, vector<64x128xf32> -> vector<64x128xf32>
    %cst_13 = arith.constant 0.000000e+00 : f32
    %14 = vector.broadcast %cst_13 : f32 to vector<64x128xf32>
    %15 = arith.maximumf %13, %14 : vector<64x128xf32>
    %16 = arith.truncf %15 : vector<64x128xf32> to vector<64x128xbf16>
    %17 = arith.extf %16 : vector<64x128xbf16> to vector<64x128xf32>
    %18 = arith.mulf %17, %17 : vector<64x128xf32>
    %cst_14 = arith.constant dense<0.000000e+00> : vector<64xf32>
    %19 = vector.multi_reduction <add>, %18, %cst_14 [1] : vector<64x128xf32> to vector<64xf32>
    %20 = vector.shape_cast %19 : vector<64xf32> to vector<64x1xf32>
    %cst_15 = arith.constant 1.000000e-24 : f32
    %21 = vector.broadcast %cst_15 : f32 to vector<64x1xf32>
    %22 = arith.maximumf %20, %21 : vector<64x1xf32>
    %23 = math.rsqrt %22 : vector<64x1xf32>
    %24 = vector.broadcast %23 : vector<64x1xf32> to vector<64x128xf32>
    %25 = arith.mulf %17, %24 : vector<64x128xf32>
    %26 = arith.truncf %25 : vector<64x128xf32> to vector<64x128xbf16>
    %c0_16 = arith.constant 0 : index
    %c0_17 = arith.constant 0 : index
    %27 = vector.load %arg8[%c0_16, %c0_17] : memref<64x128xbf16, #tpu.memory_space<vmem>>, vector<64x128xbf16>
    tpu.vector_store %arg8[%c0_16, %c0_17], %26 {strides = array<i32>} : memref<64x128xbf16, #tpu.memory_space<vmem>>, vector<64x128xbf16>,
    %28 = arith.truncf %25 : vector<64x128xf32> to vector<64x128xbf16>
    %c0_18 = arith.constant 0 : index
    %c0_19 = arith.constant 0 : index
    %29 = vector.load %arg4[%c0_18, %c0_19] : memref<128x128xbf16, #tpu.memory_space<vmem>>, vector<128x128xbf16>
    %cst_20 = arith.constant dense<0.000000e+00> : vector<64x128xf32>
    %30 = tpu.matmul %28, %29, %cst_20 {dimension_numbers = #tpu.dot_dimension_numbers<[1], [0], [0], [1], [0, 0, 1, 1], [], []>} : vector<64x128xbf16>, vector<128x128xbf16>, vector<64x128xf32> -> vector<64x128xf32>
    %cst_21 = arith.constant 0.000000e+00 : f32
    %31 = vector.broadcast %cst_21 : f32 to vector<64x128xf32>
    %32 = arith.maximumf %30, %31 : vector<64x128xf32>
    %33 = arith.truncf %32 : vector<64x128xf32> to vector<64x128xbf16>
    %c0_22 = arith.constant 0 : index
    %c0_23 = arith.constant 0 : index
    %34 = vector.load %arg5[%c0_22, %c0_23] : memref<128x128xbf16, #tpu.memory_space<vmem>>, vector<128x128xbf16>
    %cst_24 = arith.constant dense<0.000000e+00> : vector<64x128xf32>
    %35 = tpu.matmul %33, %34, %cst_24 {dimension_numbers = #tpu.dot_dimension_numbers<[1], [0], [0], [1], [0, 0, 1, 1], [], []>} : vector<64x128xbf16>, vector<128x128xbf16>, vector<64x128xf32> -> vector<64x128xf32>
    %36 = arith.negf %35 : vector<64x128xf32>
    %37 = math.exp %36 : vector<64x128xf32>
    %cst_25 = arith.constant 1.000000e+00 : f32
    %38 = vector.broadcast %cst_25 : f32 to vector<64x128xf32>
    %39 = arith.addf %38, %37 : vector<64x128xf32>
    %40 = arith.divf %38, %39 : vector<64x128xf32>
    %41 = tpu.iota {dimensions = array<i32: 1>} : vector<64x128xi32>
    %c32_i32 = arith.constant 32 : i32
    %42 = vector.broadcast %c32_i32 : i32 to vector<64x128xi32>
    %43 = arith.cmpi slt, %41, %42 : vector<64x128xi32>
    %cst_26 = arith.constant 0.000000e+00 : f32
    %44 = vector.broadcast %cst_26 : f32 to vector<64x128xf32>
    %45 = arith.select %43, %40, %44 : vector<64x128xi1>, vector<64x128xf32>
    %46 = arith.truncf %45 : vector<64x128xf32> to vector<64x128xbf16>
    %47 = tpu.iota {dimensions = array<i32: 1>} : vector<128x64xi32>
    %c0_27 = arith.constant 0 : index
    %c0_28 = arith.constant 0 : index
    %48 = vector.load %arg6[%c0_27, %c0_28] : memref<128x1xi32, #tpu.memory_space<vmem>>, vector<128x1xi32>
    %49 = vector.broadcast %48 : vector<128x1xi32> to vector<128x64xi32>
    %50 = arith.cmpi eq, %47, %49 : vector<128x64xi32>
    %51 = arith.extui %50 : vector<128x64xi1> to vector<128x64xi32>
    %52 = arith.sitofp %51 : vector<128x64xi32> to vector<128x64xf32>
    %53 = arith.truncf %52 : vector<128x64xf32> to vector<128x64xbf16>
    %c0_29 = arith.constant 0 : index
    %c0_30 = arith.constant 0 : index
    %54 = vector.load %arg7[%c0_29, %c0_30] : memref<128x1xi32, #tpu.memory_space<vmem>>, vector<128x1xi32>
    %55 = vector.broadcast %54 : vector<128x1xi32> to vector<128x64xi32>
    %56 = arith.cmpi eq, %47, %55 : vector<128x64xi32>
    %57 = arith.extui %56 : vector<128x64xi1> to vector<128x64xi32>
    %58 = arith.sitofp %57 : vector<128x64xi32> to vector<128x64xf32>
    %59 = arith.truncf %58 : vector<128x64xf32> to vector<128x64xbf16>
    %cst_31 = arith.constant dense<0.000000e+00> : vector<128x128xf32>
    %60 = tpu.matmul %53, %46, %cst_31 {dimension_numbers = #tpu.dot_dimension_numbers<[1], [0], [0], [1], [0, 0, 1, 1], [], []>} : vector<128x64xbf16>, vector<64x128xbf16>, vector<128x128xf32> -> vector<128x128xf32>
    %cst_32 = arith.constant dense<0.000000e+00> : vector<128x128xf32>
    %61 = tpu.matmul %59, %46, %cst_32 {dimension_numbers = #tpu.dot_dimension_numbers<[1], [0], [0], [1], [0, 0, 1, 1], [], []>} : vector<128x64xbf16>, vector<64x128xbf16>, vector<128x128xf32> -> vector<128x128xf32>
    %62 = arith.mulf %60, %61 : vector<128x128xf32>
    %cst_33 = arith.constant dense<0.000000e+00> : vector<128xf32>
    %63 = vector.multi_reduction <add>, %62, %cst_33 [1] : vector<128x128xf32> to vector<128xf32>
    %64 = vector.shape_cast %63 : vector<128xf32> to vector<128x1xf32>
    %c0_34 = arith.constant 0 : index
    %c0_35 = arith.constant 0 : index
    %65 = vector.load %arg9[%c0_34, %c0_35] : memref<128x1xf32, #tpu.memory_space<vmem>>, vector<128x1xf32>
    tpu.vector_store %arg9[%c0_34, %c0_35], %64 {strides = array<i32>} : memref<128x1xf32, #tpu.memory_space<vmem>>, vector<128x1xf32>,
    return
  }
}

</mosaic_0001>

<llo_original>
// kernel: forward.1
$region0: #{forward.1}
  #allocation0 [shape = 'u32[]', space=smem, size = 0x4, offset = 0x4, fixed_abs, tag = 'smem constant byte address 0x4 - core index']
  #allocation1 [shape = 'u32[144,128]{1,0:T(1,128)}', space=vmem, size = 0x12000, scoped, tag = 'internal scratch']
  %s0 = inlined_call_operand.vmem [shape: bf16[64,64], index: 0, kind: input, shape index: {}]
  %s1 = inlined_call_operand.vmem [shape: bf16[64,128], index: 1, kind: input, shape index: {}]
  %s2 = inlined_call_operand.vmem [shape: bf16[128,128], index: 2, kind: input, shape index: {}]
  %s3 = inlined_call_operand.vmem [shape: bf16[128,128], index: 3, kind: input, shape index: {}]
  %s4 = inlined_call_operand.vmem [shape: bf16[128,128], index: 4, kind: input, shape index: {}]
  %s5 = inlined_call_operand.vmem [shape: bf16[128,128], index: 5, kind: input, shape index: {}]
  %s6 = inlined_call_operand.vmem [shape: s32[128,1], index: 6, kind: input, shape index: {}]
  %s7 = inlined_call_operand.vmem [shape: s32[128,1], index: 7, kind: input, shape index: {}]
  %s8 = inlined_call_operand.vmem [shape: bf16[64,128], index: 8, kind: output, shape index: {0}]
  %s9 = inlined_call_operand.vmem [shape: f32[128,1], index: 9, kind: output, shape index: {1}]
  %10 = xla_tuple %s8, %s9
  %s11 = sld [smem:[#allocation0]]
  $region50: #{forward.1} parent=0
    _
  %s13 = ssub.s32 1, %s11
  %s14 = scalar_select 0, %s13, %s11
  // Predicated region
  $region2: #{forward.1} parent=0 // pred_check
    _
  $region3: #{forward.1} parent=0 // pred_check_branch
    %16 = sbr.rel (0) target = $region5
  $region4: #{forward.1} parent=0 // pred_region
    _
  $region5: #{forward.1} parent=0 // pred_fallthru
    _
  // Predicated region
  $region6: #{forward.1} parent=0 // pred_check
    _
  $region7: #{forward.1} parent=0 // pred_check_branch
    %18 = sbr.rel (0) target = $region9
  $region8: #{forward.1} parent=0 // pred_region
    _
  $region9: #{forward.1} parent=0 // pred_fallthru
    _
  // Predicated region
  $region10: #{forward.1} parent=0 // pred_check
    _
  $region11: #{forward.1} parent=0 // pred_check_branch
    %20 = sbr.rel (0) target = $region13
  $region12: #{forward.1} parent=0 // pred_region
    _
  $region13: #{forward.1} parent=0 // pred_fallthru
    _
  // Predicated region
  $region14: #{forward.1} parent=0 // pred_check
    _
  $region15: #{forward.1} parent=0 // pred_check_branch
    %22 = sbr.rel (0) target = $region17
  $region16: #{forward.1} parent=0 // pred_region
    _
  $region17: #{forward.1} parent=0 // pred_fallthru
    _
  // Predicated region
  $region18: #{forward.1} parent=0 // pred_check
    _
  $region19: #{forward.1} parent=0 // pred_check_branch
    %24 = sbr.rel (0) target = $region21
  $region20: #{forward.1} parent=0 // pred_region
    _
  $region21: #{forward.1} parent=0 // pred_fallthru
    _
  // Predicated region
  $region22: #{forward.1} parent=0 // pred_check
    _
  $region23: #{forward.1} parent=0 // pred_check_branch
    %26 = sbr.rel (0) target = $region25
  $region24: #{forward.1} parent=0 // pred_region
    _
  $region25: #{forward.1} parent=0 // pred_fallthru
    _
  // Predicated region
  $region26: #{forward.1} parent=0 // pred_check
    _
  $region27: #{forward.1} parent=0 // pred_check_branch
    %28 = sbr.rel (0) target = $region29
  $region28: #{forward.1} parent=0 // pred_region
    _
  $region29: #{forward.1} parent=0 // pred_fallthru
    _
  // Predicated region
  $region30: #{forward.1} parent=0 // pred_check
    _
  $region31: #{forward.1} parent=0 // pred_check_branch
    %30 = sbr.rel (0) target = $region33
  $region32: #{forward.1} parent=0 // pred_region
    _
  $region33: #{forward.1} parent=0 // pred_fallthru
    _
  %v32 = vld [vmem:[%s1] sm:$0xf]
  %v33 = vld [vmem:[%s1 + $0x4] sm:$0xf]
  %v34 = vld [vmem:[%s1 + $0x8] sm:$0xf]
  %v35 = vld [vmem:[%s1 + $0xc] sm:$0xf]
  %v36 = vld [vmem:[%s1 + $0x10] sm:$0xf]
  %v37 = vld [vmem:[%s1 + $0x14] sm:$0xf]
  %v38 = vld [vmem:[%s1 + $0x18] sm:$0xf]
  %v39 = vld [vmem:[%s1 + $0x1c] sm:$0xf]
  %v40 = vld [vmem:[%s0] sm:$0xf]
  %v41 = vld [vmem:[%s0 + $0x4] sm:$0xf]
  %v42 = vld [vmem:[%s0 + $0x8] sm:$0xf]
  %v43 = vld [vmem:[%s0 + $0xc] sm:$0xf]
  %v44 = vld [vmem:[%s0 + $0x10] sm:$0xf]
  %v45 = vld [vmem:[%s0 + $0x14] sm:$0xf]
  %v46 = vld [vmem:[%s0 + $0x18] sm:$0xf]
  %v47 = vld [vmem:[%s0 + $0x1c] sm:$0xf]
  %v56 = vunpack.c.l.b16 %v40
  %v57 = vunpack.c.l.b16 %v41
  %v58 = vunpack.c.l.b16 %v42
  %v59 = vunpack.c.l.b16 %v43
  %v60 = vunpack.c.l.b16 %v44
  %v61 = vunpack.c.l.b16 %v45
  %v62 = vunpack.c.l.b16 %v46
  %v63 = vunpack.c.l.b16 %v47
  %v64 = vpack.c.b16 %v57, %v56
  %v65 = vpack.c.b16 %v59, %v58
  %v66 = vpack.c.b16 %v61, %v60
  %v67 = vpack.c.b16 %v63, %v62
  %v76 = vunpack.c.l.b16 %v32
  %v77 = vunpack.c.l.b16 %v33
  %v78 = vunpack.c.l.b16 %v34
  %v79 = vunpack.c.l.b16 %v35
  %v80 = vunpack.c.l.b16 %v36
  %v81 = vunpack.c.l.b16 %v37
  %v82 = vunpack.c.l.b16 %v38
  %v83 = vunpack.c.l.b16 %v39
  %v84 = vpack.c.b16 %v77, %v76
  %v85 = vpack.c.b16 %v79, %v78
  %v86 = vpack.c.b16 %v81, %v80
  %v87 = vpack.c.b16 %v83, %v82
  %vm92 = vcmask 523264
  %v94 = vsel %vm92, %v64, 0
  %v97 = vsel %vm92, %v65, 0
  %v100 = vsel %vm92, %v66, 0
  %v103 = vsel %vm92, %v67, 0
  %105 = vmatprep.subr.bf16.mxu0 0
  %106 = vmatpush1.bf16.msra.mxu0 %v84
  %107 = vmatprep.subr.bf16.mxu0 0
  %108 = vmatpush1.bf16.msra.mxu0 %v85
  %109 = vmatprep.subr.bf16.mxu0 0
  %110 = vmatpush1.bf16.msra.mxu0 %v86
  %111 = vmatprep.subr.bf16.mxu0 0
  %112 = vmatpush1.bf16.msra.mxu0 %v87
  %113 = vmatprep.subr.bf16.mxu0 0
  %114 = vmatpush1.bf16.msra.mxu0 0
  %115 = vmatprep.subr.bf16.mxu0 0
  %116 = vmatpush1.bf16.msra.mxu0 0
  %117 = vmatprep.subr.bf16.mxu0 0
  %118 = vmatpush1.bf16.msra.mxu0 0
  %119 = vmatprep.subr.bf16.mxu0 0
  %120 = vmatpush1.bf16.msra.mxu0 0
  %121 = vmatprep.subr.bf16.mxu0 0
  %122 = vmatpush1.bf16.msra.mxu0 0
  %123 = vmatprep.subr.bf16.mxu0 0
  %124 = vmatpush1.bf16.msra.mxu0 0
  %125 = vmatprep.subr.bf16.mxu0 0
  %126 = vmatpush1.bf16.msra.mxu0 0
  %127 = vmatprep.subr.bf16.mxu0 0
  %128 = vmatpush1.bf16.msra.mxu0 0
  %129 = vmatprep.subr.bf16.mxu0 0
  %130 = vmatpush1.bf16.msra.mxu0 0
  %131 = vmatprep.subr.bf16.mxu0 0
  %132 = vmatpush1.bf16.msra.mxu0 0
  %133 = vmatprep.subr.bf16.mxu0 0
  %134 = vmatpush1.bf16.msra.mxu0 0
  %135 = vmatprep.subr.bf16.mxu0 0
  %136 = vmatpush1.bf16.msra.mxu0 0
  %137 = vmatprep.mubr.bf16.mxu0 0
  %138 = vmatmul.mubr.bf16.gmra.mrb[0].mxu0 %v94
  %v139 = vpop.f32.mrb[0].mxu0
  %v140 = vadd.f32 0.0, %v139
  %v141 = vpop.f32.mrb[0].mxu0
  %v142 = vpop.f32.mrb[0].mxu0
  %v143 = vadd.f32 0.0, %v142
  %v144 = vpop.f32.mrb[0].mxu0
  %145 = vmatprep.mubr.bf16.mxu0 0
  %146 = vmatmul.mubr.bf16.gmra.mrb[0].mxu0 %v97
  %v147 = vpop.f32.mrb[0].mxu0
  %v148 = vadd.f32 0.0, %v147
  %v149 = vpop.f32.mrb[0].mxu0
  %v150 = vpop.f32.mrb[0].mxu0
  %v151 = vadd.f32 0.0, %v150
  %v152 = vpop.f32.mrb[0].mxu0
  %153 = vmatprep.mubr.bf16.mxu0 0
  %154 = vmatmul.mubr.bf16.gmra.mrb[0].mxu0 %v100
  %v155 = vpop.f32.mrb[0].mxu0
  %v156 = vadd.f32 0.0, %v155
  %v157 = vpop.f32.mrb[0].mxu0
  %v158 = vpop.f32.mrb[0].mxu0
  %v159 = vadd.f32 0.0, %v158
  %v160 = vpop.f32.mrb[0].mxu0
  %161 = vmatprep.mubr.bf16.mxu0 0
  %162 = vmatmul.mubr.bf16.gmra.mrb[0].mxu0 %v103
  %v163 = vpop.f32.mrb[0].mxu0
  %v164 = vadd.f32 0.0, %v163
  %v165 = vpop.f32.mrb[0].mxu0
  %v166 = vpop.f32.mrb[0].mxu0
  %v167 = vadd.f32 0.0, %v166
  %v168 = vpop.f32.mrb[0].mxu0
  %169 = vdwg.mxu0
  %v170 = vpack.c.bf16 %v143, %v140
  %v171 = vpack.c.bf16 %v151, %v148
  %v172 = vpack.c.bf16 %v159, %v156
  %v173 = vpack.c.bf16 %v167, %v164
  %v174 = vld [vmem:[%s2] sm:$0xf]
  %v175 = vld [vmem:[%s2 + $0x4] sm:$0xf]
  %v176 = vld [vmem:[%s2 + $0x8] sm:$0xf]
  %v177 = vld [vmem:[%s2 + $0xc] sm:$0xf]
  %v178 = vld [vmem:[%s2 + $0x10] sm:$0xf]
  %v179 = vld [vmem:[%s2 + $0x14] sm:$0xf]
  %v180 = vld [vmem:[%s2 + $0x18] sm:$0xf]
  %v181 = vld [vmem:[%s2 + $0x1c] sm:$0xf]
  %v182 = vld [vmem:[%s2 + $0x20] sm:$0xf]
  %v183 = vld [vmem:[%s2 + $0x24] sm:$0xf]
  %v184 = vld [vmem:[%s2 + $0x28] sm:$0xf]
  %v185 = vld [vmem:[%s2 + $0x2c] sm:$0xf]
  %v186 = vld [vmem:[%s2 + $0x30] sm:$0xf]
  %v187 = vld [vmem:[%s2 + $0x34] sm:$0xf]
  %v188 = vld [vmem:[%s2 + $0x38] sm:$0xf]
  %v189 = vld [vmem:[%s2 + $0x3c] sm:$0xf]
  %v206 = vunpack.c.l.b16 %v174
  %v207 = vunpack.c.l.b16 %v175
  %v208 = vunpack.c.l.b16 %v176
  %v209 = vunpack.c.l.b16 %v177
  %v210 = vunpack.c.l.b16 %v178
  %v211 = vunpack.c.l.b16 %v179
  %v212 = vunpack.c.l.b16 %v180
  %v213 = vunpack.c.l.b16 %v181
  %v214 = vunpack.c.l.b16 %v182
  %v215 = vunpack.c.l.b16 %v183
  %v216 = vunpack.c.l.b16 %v184
  %v217 = vunpack.c.l.b16 %v185
  %v218 = vunpack.c.l.b16 %v186
  %v219 = vunpack.c.l.b16 %v187
  %v220 = vunpack.c.l.b16 %v188
  %v221 = vunpack.c.l.b16 %v189
  %v222 = vpack.c.b16 %v207, %v206
  %v223 = vpack.c.b16 %v209, %v208
  %v224 = vpack.c.b16 %v211, %v210
  %v225 = vpack.c.b16 %v213, %v212
  %v226 = vpack.c.b16 %v215, %v214
  %v227 = vpack.c.b16 %v217, %v216
  %v228 = vpack.c.b16 %v219, %v218
  %v229 = vpack.c.b16 %v221, %v220
  %238 = vmatprep.subr.bf16.mxu0 0
  %239 = vmatpush1.bf16.msra.mxu0 %v222
  %240 = vmatprep.subr.bf16.mxu0 0
  %241 = vmatpush1.bf16.msra.mxu0 %v223
  %242 = vmatprep.subr.bf16.mxu0 0
  %243 = vmatpush1.bf16.msra.mxu0 %v224
  %244 = vmatprep.subr.bf16.mxu0 0
  %245 = vmatpush1.bf16.msra.mxu0 %v225
  %246 = vmatprep.subr.bf16.mxu0 0
  %247 = vmatpush1.bf16.msra.mxu0 %v226
  %248 = vmatprep.subr.bf16.mxu0 0
  %249 = vmatpush1.bf16.msra.mxu0 %v227
  %250 = vmatprep.subr.bf16.mxu0 0
  %251 = vmatpush1.bf16.msra.mxu0 %v228
  %252 = vmatprep.subr.bf16.mxu0 0
  %253 = vmatpush1.bf16.msra.mxu0 %v229
  %254 = vmatprep.subr.bf16.mxu0 0
  %255 = vmatpush1.bf16.msra.mxu0 0
  %256 = vmatprep.subr.bf16.mxu0 0
  %257 = vmatpush1.bf16.msra.mxu0 0
  %258 = vmatprep.subr.bf16.mxu0 0
  %259 = vmatpush1.bf16.msra.mxu0 0
  %260 = vmatprep.subr.bf16.mxu0 0
  %261 = vmatpush1.bf16.msra.mxu0 0
  %262 = vmatprep.subr.bf16.mxu0 0
  %263 = vmatpush1.bf16.msra.mxu0 0
  %264 = vmatprep.subr.bf16.mxu0 0
  %265 = vmatpush1.bf16.msra.mxu0 0
  %266 = vmatprep.subr.bf16.mxu0 0
  %267 = vmatpush1.bf16.msra.mxu0 0
  %268 = vmatprep.subr.bf16.mxu0 0
  %269 = vmatpush1.bf16.msra.mxu0 0
  %270 = vmatprep.mubr.bf16.mxu0 0
  %271 = vmatmul.mubr.bf16.gmra.mrb[0].mxu0 %v170
  %v272 = vpop.f32.mrb[0].mxu0
  %v273 = vadd.f32 0.0, %v272
  %v274 = vpop.f32.mrb[0].mxu0
  %v275 = vpop.f32.mrb[0].mxu0
  %v276 = vadd.f32 0.0, %v275
  %v277 = vpop.f32.mrb[0].mxu0
  %278 = vmatprep.mubr.bf16.mxu0 0
  %279 = vmatmul.mubr.bf16.gmra.mrb[0].mxu0 %v171
  %v280 = vpop.f32.mrb[0].mxu0
  %v281 = vadd.f32 0.0, %v280
  %v282 = vpop.f32.mrb[0].mxu0
  %v283 = vpop.f32.mrb[0].mxu0
  %v284 = vadd.f32 0.0, %v283
  %v285 = vpop.f32.mrb[0].mxu0
  %286 = vmatprep.mubr.bf16.mxu0 0
  %287 = vmatmul.mubr.bf16.gmra.mrb[0].mxu0 %v172
  %v288 = vpop.f32.mrb[0].mxu0
  %v289 = vadd.f32 0.0, %v288
  %v290 = vpop.f32.mrb[0].mxu0
  %v291 = vpop.f32.mrb[0].mxu0
  %v292 = vadd.f32 0.0, %v291
  %v293 = vpop.f32.mrb[0].mxu0
  %294 = vmatprep.mubr.bf16.mxu0 0
  %295 = vmatmul.mubr.bf16.gmra.mrb[0].mxu0 %v173
  %v296 = vpop.f32.mrb[0].mxu0
  %v297 = vadd.f32 0.0, %v296
  %v298 = vpop.f32.mrb[0].mxu0
  %v299 = vpop.f32.mrb[0].mxu0
  %v300 = vadd.f32 0.0, %v299
  %v301 = vpop.f32.mrb[0].mxu0
  %302 = vdwg.mxu0
  %v303 = vmax.f32 %v273, 0.0
  %v304 = vmax.f32 %v276, 0.0
  %v305 = vmax.f32 %v281, 0.0
  %v306 = vmax.f32 %v284, 0.0
  %v307 = vmax.f32 %v289, 0.0
  %v308 = vmax.f32 %v292, 0.0
  %v309 = vmax.f32 %v297, 0.0
  %v310 = vmax.f32 %v300, 0.0
  %v311 = vpack.c.bf16 %v304, %v303
  %v312 = vpack.c.bf16 %v306, %v305
  %v313 = vpack.c.bf16 %v308, %v307
  %v314 = vpack.c.bf16 %v310, %v309
  %315 = vmatprep.subr.bf16.mxu0 0
  %316 = vmatpush1.bf16.msra.mxu0 %v311
  %317 = vmatprep.subr.bf16.mxu0 0
  %318 = vmatpush1.bf16.msra.mxu0 %v312
  %319 = vmatprep.subr.bf16.mxu0 0
  %320 = vmatpush1.bf16.msra.mxu0 %v313
  %321 = vmatprep.subr.bf16.mxu0 0
  %322 = vmatpush1.bf16.msra.mxu0 %v314
  %323 = vmatprep.subr.bf16.mxu0 0
  %324 = vmatpush1.bf16.msra.mxu0 0
  %325 = vmatprep.subr.bf16.mxu0 0
  %326 = vmatpush1.bf16.msra.mxu0 0
  %327 = vmatprep.subr.bf16.mxu0 0
  %328 = vmatpush1.bf16.msra.mxu0 0
  %329 = vmatprep.subr.bf16.mxu0 0
  %330 = vmatpush1.bf16.msra.mxu0 0
  %331 = vmatprep.subr.bf16.mxu0 0
  %332 = vmatpush1.bf16.msra.mxu0 0
  %333 = vmatprep.subr.bf16.mxu0 0
  %334 = vmatpush1.bf16.msra.mxu0 0
  %335 = vmatprep.subr.bf16.mxu0 0
  %336 = vmatpush1.bf16.msra.mxu0 0
  %337 = vmatprep.subr.bf16.mxu0 0
  %338 = vmatpush1.bf16.msra.mxu0 0
  %339 = vmatprep.subr.bf16.mxu0 0
  %340 = vmatpush1.bf16.msra.mxu0 0
  %341 = vmatprep.subr.bf16.mxu0 0
  %342 = vmatpush1.bf16.msra.mxu0 0
  %343 = vmatprep.subr.bf16.mxu0 0
  %344 = vmatpush1.bf16.msra.mxu0 0
  %345 = vmatprep.subr.bf16.mxu0 0
  %346 = vmatpush1.bf16.msra.mxu0 0
  %347 = vmatprep.mubr.bf16.mxu0 0
  %348 = vmatmul.mubr.bf16.gmra.mrb[0].mxu0 %v94
  %v349 = vpop.f32.mrb[0].mxu0
  %v350 = vadd.f32 0.0, %v349
  %v351 = vpop.f32.mrb[0].mxu0
  %v352 = vpop.f32.mrb[0].mxu0
  %v353 = vadd.f32 0.0, %v352
  %v354 = vpop.f32.mrb[0].mxu0
  %355 = vmatprep.mubr.bf16.mxu0 0
  %356 = vmatmul.mubr.bf16.gmra.mrb[0].mxu0 %v97
  %v357 = vpop.f32.mrb[0].mxu0
  %v358 = vadd.f32 0.0, %v357
  %v359 = vpop.f32.mrb[0].mxu0
  %v360 = vpop.f32.mrb[0].mxu0
  %v361 = vadd.f32 0.0, %v360
  %v362 = vpop.f32.mrb[0].mxu0
  %363 = vmatprep.mubr.bf16.mxu0 0
  %364 = vmatmul.mubr.bf16.gmra.mrb[0].mxu0 %v100
  %v365 = vpop.f32.mrb[0].mxu0
  %v366 = vadd.f32 0.0, %v365
  %v367 = vpop.f32.mrb[0].mxu0
  %v368 = vpop.f32.mrb[0].mxu0
  %v369 = vadd.f32 0.0, %v368
  %v370 = vpop.f32.mrb[0].mxu0
  %371 = vmatprep.mubr.bf16.mxu0 0
  %372 = vmatmul.mubr.bf16.gmra.mrb[0].mxu0 %v103
  %v373 = vpop.f32.mrb[0].mxu0
  %v374 = vadd.f32 0.0, %v373
  %v375 = vpop.f32.mrb[0].mxu0
  %v376 = vpop.f32.mrb[0].mxu0
  %v377 = vadd.f32 0.0, %v376
  %v378 = vpop.f32.mrb[0].mxu0
  %379 = vdwg.mxu0
  %v380 = vpack.c.bf16 %v353, %v350
  %v381 = vpack.c.bf16 %v361, %v358
  %v382 = vpack.c.bf16 %v369, %v366
  %v383 = vpack.c.bf16 %v377, %v374
  %v384 = vld [vmem:[%s3] sm:$0xf]
  %v385 = vld [vmem:[%s3 + $0x4] sm:$0xf]
  %v386 = vld [vmem:[%s3 + $0x8] sm:$0xf]
  %v387 = vld [vmem:[%s3 + $0xc] sm:$0xf]
  %v388 = vld [vmem:[%s3 + $0x10] sm:$0xf]
  %v389 = vld [vmem:[%s3 + $0x14] sm:$0xf]
  %v390 = vld [vmem:[%s3 + $0x18] sm:$0xf]
  %v391 = vld [vmem:[%s3 + $0x1c] sm:$0xf]
  %v392 = vld [vmem:[%s3 + $0x20] sm:$0xf]
  %v393 = vld [vmem:[%s3 + $0x24] sm:$0xf]
  %v394 = vld [vmem:[%s3 + $0x28] sm:$0xf]
  %v395 = vld [vmem:[%s3 + $0x2c] sm:$0xf]
  %v396 = vld [vmem:[%s3 + $0x30] sm:$0xf]
  %v397 = vld [vmem:[%s3 + $0x34] sm:$0xf]
  %v398 = vld [vmem:[%s3 + $0x38] sm:$0xf]
  %v399 = vld [vmem:[%s3 + $0x3c] sm:$0xf]
  %v416 = vunpack.c.l.b16 %v384
  %v417 = vunpack.c.l.b16 %v385
  %v418 = vunpack.c.l.b16 %v386
  %v419 = vunpack.c.l.b16 %v387
  %v420 = vunpack.c.l.b16 %v388
  %v421 = vunpack.c.l.b16 %v389
  %v422 = vunpack.c.l.b16 %v390
  %v423 = vunpack.c.l.b16 %v391
  %v424 = vunpack.c.l.b16 %v392
  %v425 = vunpack.c.l.b16 %v393
  %v426 = vunpack.c.l.b16 %v394
  %v427 = vunpack.c.l.b16 %v395
  %v428 = vunpack.c.l.b16 %v396
  %v429 = vunpack.c.l.b16 %v397
  %v430 = vunpack.c.l.b16 %v398
  %v431 = vunpack.c.l.b16 %v399
  %v432 = vpack.c.b16 %v417, %v416
  %v433 = vpack.c.b16 %v419, %v418
  %v434 = vpack.c.b16 %v421, %v420
  %v435 = vpack.c.b16 %v423, %v422
  %v436 = vpack.c.b16 %v425, %v424
  %v437 = vpack.c.b16 %v427, %v426
  %v438 = vpack.c.b16 %v429, %v428
  %v439 = vpack.c.b16 %v431, %v430
  %448 = vmatprep.subr.bf16.mxu0 0
  %449 = vmatpush1.bf16.msra.mxu0 %v432
  %450 = vmatprep.subr.bf16.mxu0 0
  %451 = vmatpush1.bf16.msra.mxu0 %v433
  %452 = vmatprep.subr.bf16.mxu0 0
  %453 = vmatpush1.bf16.msra.mxu0 %v434
  %454 = vmatprep.subr.bf16.mxu0 0
  %455 = vmatpush1.bf16.msra.mxu0 %v435
  %456 = vmatprep.subr.bf16.mxu0 0
  %457 = vmatpush1.bf16.msra.mxu0 %v436
  %458 = vmatprep.subr.bf16.mxu0 0
  %459 = vmatpush1.bf16.msra.mxu0 %v437
  %460 = vmatprep.subr.bf16.mxu0 0
  %461 = vmatpush1.bf16.msra.mxu0 %v438
  %462 = vmatprep.subr.bf16.mxu0 0
  %463 = vmatpush1.bf16.msra.mxu0 %v439
  %464 = vmatprep.subr.bf16.mxu0 0
  %465 = vmatpush1.bf16.msra.mxu0 0
  %466 = vmatprep.subr.bf16.mxu0 0
  %467 = vmatpush1.bf16.msra.mxu0 0
  %468 = vmatprep.subr.bf16.mxu0 0
  %469 = vmatpush1.bf16.msra.mxu0 0
  %470 = vmatprep.subr.bf16.mxu0 0
  %471 = vmatpush1.bf16.msra.mxu0 0
  %472 = vmatprep.subr.bf16.mxu0 0
  %473 = vmatpush1.bf16.msra.mxu0 0
  %474 = vmatprep.subr.bf16.mxu0 0
  %475 = vmatpush1.bf16.msra.mxu0 0
  %476 = vmatprep.subr.bf16.mxu0 0
  %477 = vmatpush1.bf16.msra.mxu0 0
  %478 = vmatprep.subr.bf16.mxu0 0
  %479 = vmatpush1.bf16.msra.mxu0 0
  %480 = vmatprep.mubr.bf16.mxu0 0
  %481 = vmatmul.mubr.bf16.gmra.mrb[0].mxu0 %v380
  %v482 = vpop.f32.mrb[0].mxu0
  %v483 = vadd.f32 0.0, %v482
  %v484 = vpop.f32.mrb[0].mxu0
  %v485 = vpop.f32.mrb[0].mxu0
  %v486 = vadd.f32 0.0, %v485
  %v487 = vpop.f32.mrb[0].mxu0
  %488 = vmatprep.mubr.bf16.mxu0 0
  %489 = vmatmul.mubr.bf16.gmra.mrb[0].mxu0 %v381
  %v490 = vpop.f32.mrb[0].mxu0
  %v491 = vadd.f32 0.0, %v490
  %v492 = vpop.f32.mrb[0].mxu0
  %v493 = vpop.f32.mrb[0].mxu0
  %v494 = vadd.f32 0.0, %v493
  %v495 = vpop.f32.mrb[0].mxu0
  %496 = vmatprep.mubr.bf16.mxu0 0
  %497 = vmatmul.mubr.bf16.gmra.mrb[0].mxu0 %v382
  %v498 = vpop.f32.mrb[0].mxu0
  %v499 = vadd.f32 0.0, %v498
  %v500 = vpop.f32.mrb[0].mxu0
  %v501 = vpop.f32.mrb[0].mxu0
  %v502 = vadd.f32 0.0, %v501
  %v503 = vpop.f32.mrb[0].mxu0
  %504 = vmatprep.mubr.bf16.mxu0 0
  %505 = vmatmul.mubr.bf16.gmra.mrb[0].mxu0 %v383
  %v506 = vpop.f32.mrb[0].mxu0
  %v507 = vadd.f32 0.0, %v506
  %v508 = vpop.f32.mrb[0].mxu0
  %v509 = vpop.f32.mrb[0].mxu0
  %v510 = vadd.f32 0.0, %v509
  %v511 = vpop.f32.mrb[0].mxu0
  %512 = vdwg.mxu0
  %v513 = vmax.f32 %v483, 0.0
  %v514 = vmax.f32 %v486, 0.0
  %v515 = vmax.f32 %v491, 0.0
  %v516 = vmax.f32 %v494, 0.0
  %v517 = vmax.f32 %v499, 0.0
  %v518 = vmax.f32 %v502, 0.0
  %v519 = vmax.f32 %v507, 0.0
  %v520 = vmax.f32 %v510, 0.0
  %v521 = vpack.c.bf16 %v514, %v513
  %v522 = vpack.c.bf16 %v516, %v515
  %v523 = vpack.c.bf16 %v518, %v517
  %v524 = vpack.c.bf16 %v520, %v519
  %v525 = vunpack.c.l.bf16 %v521
  %v526 = vunpack.c.h.bf16 %v521
  %v527 = vunpack.c.l.bf16 %v522
  %v528 = vunpack.c.h.bf16 %v522
  %v529 = vunpack.c.l.bf16 %v523
  %v530 = vunpack.c.h.bf16 %v523
  %v531 = vunpack.c.l.bf16 %v524
  %v532 = vunpack.c.h.bf16 %v524
  %v533 = vmul.f32 %v525, %v525
  %v534 = vmul.f32 %v526, %v526
  %v535 = vmul.f32 %v527, %v527
  %v536 = vmul.f32 %v528, %v528
  %v537 = vmul.f32 %v529, %v529
  %v538 = vmul.f32 %v530, %v530
  %v539 = vmul.f32 %v531, %v531
  %v540 = vmul.f32 %v532, %v532
  %541 = vadd.xlane.f32.xlu0 %v533
  %v542 = vpop.xlane.xlu0 %541
  %543 = vadd.xlane.f32.xlu0 %v534
  %v544 = vpop.xlane.xlu0 %543
  %545 = vadd.xlane.f32.xlu0 %v535
  %v546 = vpop.xlane.xlu0 %545
  %547 = vadd.xlane.f32.xlu0 %v536
  %v548 = vpop.xlane.xlu0 %547
  %549 = vadd.xlane.f32.xlu0 %v537
  %v550 = vpop.xlane.xlu0 %549
  %551 = vadd.xlane.f32.xlu0 %v538
  %v552 = vpop.xlane.xlu0 %551
  %553 = vadd.xlane.f32.xlu0 %v539
  %v554 = vpop.xlane.xlu0 %553
  %555 = vadd.xlane.f32.xlu0 %v540
  %v556 = vpop.xlane.xlu0 %555
  %v557 = vmax.f32 %v542, 1e-24
  %v558 = vmax.f32 %v544, 1e-24
  %v559 = vmax.f32 %v546, 1e-24
  %v560 = vmax.f32 %v548, 1e-24
  %v561 = vmax.f32 %v550, 1e-24
  %v562 = vmax.f32 %v552, 1e-24
  %v563 = vmax.f32 %v554, 1e-24
  %v564 = vmax.f32 %v556, 1e-24
  %v565 = vrsqrt.pop %v557
  %v566 = vrsqrt.pop %v558
  %v567 = vrsqrt.pop %v559
  %v568 = vrsqrt.pop %v560
  %v569 = vrsqrt.pop %v561
  %v570 = vrsqrt.pop %v562
  %v571 = vrsqrt.pop %v563
  %v572 = vrsqrt.pop %v564
  %v573 = vmul.f32 %v525, %v565
  %v574 = vmul.f32 %v526, %v566
  %v575 = vmul.f32 %v527, %v567
  %v576 = vmul.f32 %v528, %v568
  %v577 = vmul.f32 %v529, %v569
  %v578 = vmul.f32 %v530, %v570
  %v579 = vmul.f32 %v531, %v571
  %v580 = vmul.f32 %v532, %v572
  %v581 = vpack.c.bf16 %v574, %v573
  %v582 = vpack.c.bf16 %v576, %v575
  %v583 = vpack.c.bf16 %v578, %v577
  %v584 = vpack.c.bf16 %v580, %v579
  %v589 = vunpack.c.l.b16 %v581
  %v590 = vunpack.c.h.b16 %v581
  %v591 = vunpack.c.l.b16 %v582
  %v592 = vunpack.c.h.b16 %v582
  %v593 = vunpack.c.l.b16 %v583
  %v594 = vunpack.c.h.b16 %v583
  %v595 = vunpack.c.l.b16 %v584
  %v596 = vunpack.c.h.b16 %v584
  %v597 = vpack.c.b16 %v589, %v589
  %v598 = vpack.c.b16 %v590, %v590
  %v599 = vpack.c.b16 %v591, %v591
  %v600 = vpack.c.b16 %v592, %v592
  %v601 = vpack.c.b16 %v593, %v593
  %v602 = vpack.c.b16 %v594, %v594
  %v603 = vpack.c.b16 %v595, %v595
  %v604 = vpack.c.b16 %v596, %v596
  %613 = vst [vmem:[%s8] sm:$0xf] %v597
  %614 = vst [vmem:[%s8 + $0x4] sm:$0xf] %v598
  %615 = vst [vmem:[%s8 + $0x8] sm:$0xf] %v599
  %616 = vst [vmem:[%s8 + $0xc] sm:$0xf] %v600
  %617 = vst [vmem:[%s8 + $0x10] sm:$0xf] %v601
  %618 = vst [vmem:[%s8 + $0x14] sm:$0xf] %v602
  %619 = vst [vmem:[%s8 + $0x18] sm:$0xf] %v603
  %620 = vst [vmem:[%s8 + $0x1c] sm:$0xf] %v604
  %v621 = vld [vmem:[%s4] sm:$0xf]
  %v622 = vld [vmem:[%s4 + $0x4] sm:$0xf]
  %v623 = vld [vmem:[%s4 + $0x8] sm:$0xf]
  %v624 = vld [vmem:[%s4 + $0xc] sm:$0xf]
  %v625 = vld [vmem:[%s4 + $0x10] sm:$0xf]
  %v626 = vld [vmem:[%s4 + $0x14] sm:$0xf]
  %v627 = vld [vmem:[%s4 + $0x18] sm:$0xf]
  %v628 = vld [vmem:[%s4 + $0x1c] sm:$0xf]
  %v629 = vld [vmem:[%s4 + $0x20] sm:$0xf]
  %v630 = vld [vmem:[%s4 + $0x24] sm:$0xf]
  %v631 = vld [vmem:[%s4 + $0x28] sm:$0xf]
  %v632 = vld [vmem:[%s4 + $0x2c] sm:$0xf]
  %v633 = vld [vmem:[%s4 + $0x30] sm:$0xf]
  %v634 = vld [vmem:[%s4 + $0x34] sm:$0xf]
  %v635 = vld [vmem:[%s4 + $0x38] sm:$0xf]
  %v636 = vld [vmem:[%s4 + $0x3c] sm:$0xf]
  %v653 = vunpack.c.l.b16 %v621
  %v654 = vunpack.c.l.b16 %v622
  %v655 = vunpack.c.l.b16 %v623
  %v656 = vunpack.c.l.b16 %v624
  %v657 = vunpack.c.l.b16 %v625
  %v658 = vunpack.c.l.b16 %v626
  %v659 = vunpack.c.l.b16 %v627
  %v660 = vunpack.c.l.b16 %v628
  %v661 = vunpack.c.l.b16 %v629
  %v662 = vunpack.c.l.b16 %v630
  %v663 = vunpack.c.l.b16 %v631
  %v664 = vunpack.c.l.b16 %v632
  %v665 = vunpack.c.l.b16 %v633
  %v666 = vunpack.c.l.b16 %v634
  %v667 = vunpack.c.l.b16 %v635
  %v668 = vunpack.c.l.b16 %v636
  %v669 = vpack.c.b16 %v654, %v653
  %v670 = vpack.c.b16 %v656, %v655
  %v671 = vpack.c.b16 %v658, %v657
  %v672 = vpack.c.b16 %v660, %v659
  %v673 = vpack.c.b16 %v662, %v661
  %v674 = vpack.c.b16 %v664, %v663
  %v675 = vpack.c.b16 %v666, %v665
  %v676 = vpack.c.b16 %v668, %v667
  %685 = vmatprep.subr.bf16.mxu0 0
  %686 = vmatpush1.bf16.msra.mxu0 %v669
  %687 = vmatprep.subr.bf16.mxu0 0
  %688 = vmatpush1.bf16.msra.mxu0 %v670
  %689 = vmatprep.subr.bf16.mxu0 0
  %690 = vmatpush1.bf16.msra.mxu0 %v671
  %691 = vmatprep.subr.bf16.mxu0 0
  %692 = vmatpush1.bf16.msra.mxu0 %v672
  %693 = vmatprep.subr.bf16.mxu0 0
  %694 = vmatpush1.bf16.msra.mxu0 %v673
  %695 = vmatprep.subr.bf16.mxu0 0
  %696 = vmatpush1.bf16.msra.mxu0 %v674
  %697 = vmatprep.subr.bf16.mxu0 0
  %698 = vmatpush1.bf16.msra.mxu0 %v675
  %699 = vmatprep.subr.bf16.mxu0 0
  %700 = vmatpush1.bf16.msra.mxu0 %v676
  %701 = vmatprep.subr.bf16.mxu0 0
  %702 = vmatpush1.bf16.msra.mxu0 0
  %703 = vmatprep.subr.bf16.mxu0 0
  %704 = vmatpush1.bf16.msra.mxu0 0
  %705 = vmatprep.subr.bf16.mxu0 0
  %706 = vmatpush1.bf16.msra.mxu0 0
  %707 = vmatprep.subr.bf16.mxu0 0
  %708 = vmatpush1.bf16.msra.mxu0 0
  %709 = vmatprep.subr.bf16.mxu0 0
  %710 = vmatpush1.bf16.msra.mxu0 0
  %711 = vmatprep.subr.bf16.mxu0 0
  %712 = vmatpush1.bf16.msra.mxu0 0
  %713 = vmatprep.subr.bf16.mxu0 0
  %714 = vmatpush1.bf16.msra.mxu0 0
  %715 = vmatprep.subr.bf16.mxu0 0
  %716 = vmatpush1.bf16.msra.mxu0 0
  %717 = vmatprep.mubr.bf16.mxu0 0
  %718 = vmatmul.mubr.bf16.gmra.mrb[0].mxu0 %v581
  %v719 = vpop.f32.mrb[0].mxu0
  %v720 = vadd.f32 0.0, %v719
  %v721 = vpop.f32.mrb[0].mxu0
  %v722 = vpop.f32.mrb[0].mxu0
  %v723 = vadd.f32 0.0, %v722
  %v724 = vpop.f32.mrb[0].mxu0
  %725 = vmatprep.mubr.bf16.mxu0 0
  %726 = vmatmul.mubr.bf16.gmra.mrb[0].mxu0 %v582
  %v727 = vpop.f32.mrb[0].mxu0
  %v728 = vadd.f32 0.0, %v727
  %v729 = vpop.f32.mrb[0].mxu0
  %v730 = vpop.f32.mrb[0].mxu0
  %v731 = vadd.f32 0.0, %v730
  %v732 = vpop.f32.mrb[0].mxu0
  %733 = vmatprep.mubr.bf16.mxu0 0
  %734 = vmatmul.mubr.bf16.gmra.mrb[0].mxu0 %v583
  %v735 = vpop.f32.mrb[0].mxu0
  %v736 = vadd.f32 0.0, %v735
  %v737 = vpop.f32.mrb[0].mxu0
  %v738 = vpop.f32.mrb[0].mxu0
  %v739 = vadd.f32 0.0, %v738
  %v740 = vpop.f32.mrb[0].mxu0
  %741 = vmatprep.mubr.bf16.mxu0 0
  %742 = vmatmul.mubr.bf16.gmra.mrb[0].mxu0 %v584
  %v743 = vpop.f32.mrb[0].mxu0
  %v744 = vadd.f32 0.0, %v743
  %v745 = vpop.f32.mrb[0].mxu0
  %v746 = vpop.f32.mrb[0].mxu0
  %v747 = vadd.f32 0.0, %v746
  %v748 = vpop.f32.mrb[0].mxu0
  %749 = vdwg.mxu0
  %v750 = vmax.f32 %v720, 0.0
  %v751 = vmax.f32 %v723, 0.0
  %v752 = vmax.f32 %v728, 0.0
  %v753 = vmax.f32 %v731, 0.0
  %v754 = vmax.f32 %v736, 0.0
  %v755 = vmax.f32 %v739, 0.0
  %v756 = vmax.f32 %v744, 0.0
  %v757 = vmax.f32 %v747, 0.0
  %v758 = vpack.c.bf16 %v751, %v750
  %v759 = vpack.c.bf16 %v753, %v752
  %v760 = vpack.c.bf16 %v755, %v754
  %v761 = vpack.c.bf16 %v757, %v756
  %v762 = vld [vmem:[%s5] sm:$0xf]
  %v763 = vld [vmem:[%s5 + $0x4] sm:$0xf]
  %v764 = vld [vmem:[%s5 + $0x8] sm:$0xf]
  %v765 = vld [vmem:[%s5 + $0xc] sm:$0xf]
  %v766 = vld [vmem:[%s5 + $0x10] sm:$0xf]
  %v767 = vld [vmem:[%s5 + $0x14] sm:$0xf]
  %v768 = vld [vmem:[%s5 + $0x18] sm:$0xf]
  %v769 = vld [vmem:[%s5 + $0x1c] sm:$0xf]
  %v770 = vld [vmem:[%s5 + $0x20] sm:$0xf]
  %v771 = vld [vmem:[%s5 + $0x24] sm:$0xf]
  %v772 = vld [vmem:[%s5 + $0x28] sm:$0xf]
  %v773 = vld [vmem:[%s5 + $0x2c] sm:$0xf]
  %v774 = vld [vmem:[%s5 + $0x30] sm:$0xf]
  %v775 = vld [vmem:[%s5 + $0x34] sm:$0xf]
  %v776 = vld [vmem:[%s5 + $0x38] sm:$0xf]
  %v777 = vld [vmem:[%s5 + $0x3c] sm:$0xf]
  %v794 = vunpack.c.l.b16 %v762
  %v795 = vunpack.c.l.b16 %v763
  %v796 = vunpack.c.l.b16 %v764
  %v797 = vunpack.c.l.b16 %v765
  %v798 = vunpack.c.l.b16 %v766
  %v799 = vunpack.c.l.b16 %v767
  %v800 = vunpack.c.l.b16 %v768
  %v801 = vunpack.c.l.b16 %v769
  %v802 = vunpack.c.l.b16 %v770
  %v803 = vunpack.c.l.b16 %v771
  %v804 = vunpack.c.l.b16 %v772
  %v805 = vunpack.c.l.b16 %v773
  %v806 = vunpack.c.l.b16 %v774
  %v807 = vunpack.c.l.b16 %v775
  %v808 = vunpack.c.l.b16 %v776
  %v809 = vunpack.c.l.b16 %v777
  %v810 = vpack.c.b16 %v795, %v794
  %v811 = vpack.c.b16 %v797, %v796
  %v812 = vpack.c.b16 %v799, %v798
  %v813 = vpack.c.b16 %v801, %v800
  %v814 = vpack.c.b16 %v803, %v802
  %v815 = vpack.c.b16 %v805, %v804
  %v816 = vpack.c.b16 %v807, %v806
  %v817 = vpack.c.b16 %v809, %v808
  %826 = vmatprep.subr.bf16.mxu0 0
  %827 = vmatpush1.bf16.msra.mxu0 %v810
  %828 = vmatprep.subr.bf16.mxu0 0
  %829 = vmatpush1.bf16.msra.mxu0 %v811
  %830 = vmatprep.subr.bf16.mxu0 0
  %831 = vmatpush1.bf16.msra.mxu0 %v812
  %832 = vmatprep.subr.bf16.mxu0 0
  %833 = vmatpush1.bf16.msra.mxu0 %v813
  %834 = vmatprep.subr.bf16.mxu0 0
  %835 = vmatpush1.bf16.msra.mxu0 %v814
  %836 = vmatprep.subr.bf16.mxu0 0
  %837 = vmatpush1.bf16.msra.mxu0 %v815
  %838 = vmatprep.subr.bf16.mxu0 0
  %839 = vmatpush1.bf16.msra.mxu0 %v816
  %840 = vmatprep.subr.bf16.mxu0 0
  %841 = vmatpush1.bf16.msra.mxu0 %v817
  %842 = vmatprep.subr.bf16.mxu0 0
  %843 = vmatpush1.bf16.msra.mxu0 0
  %844 = vmatprep.subr.bf16.mxu0 0
  %845 = vmatpush1.bf16.msra.mxu0 0
  %846 = vmatprep.subr.bf16.mxu0 0
  %847 = vmatpush1.bf16.msra.mxu0 0
  %848 = vmatprep.subr.bf16.mxu0 0
  %849 = vmatpush1.bf16.msra.mxu0 0
  %850 = vmatprep.subr.bf16.mxu0 0
  %851 = vmatpush1.bf16.msra.mxu0 0
  %852 = vmatprep.subr.bf16.mxu0 0
  %853 = vmatpush1.bf16.msra.mxu0 0
  %854 = vmatprep.subr.bf16.mxu0 0
  %855 = vmatpush1.bf16.msra.mxu0 0
  %856 = vmatprep.subr.bf16.mxu0 0
  %857 = vmatpush1.bf16.msra.mxu0 0
  %858 = vmatprep.mubr.bf16.mxu0 0
  %859 = vmatmul.mubr.bf16.gmra.mrb[0].mxu0 %v758
  %v860 = vpop.f32.mrb[0].mxu0
  %v861 = vadd.f32 0.0, %v860
  %v862 = vpop.f32.mrb[0].mxu0
  %v863 = vpop.f32.mrb[0].mxu0
  %v864 = vadd.f32 0.0, %v863
  %v865 = vpop.f32.mrb[0].mxu0
  %866 = vmatprep.mubr.bf16.mxu0 0
  %867 = vmatmul.mubr.bf16.gmra.mrb[0].mxu0 %v759
  %v868 = vpop.f32.mrb[0].mxu0
  %v869 = vadd.f32 0.0, %v868
  %v870 = vpop.f32.mrb[0].mxu0
  %v871 = vpop.f32.mrb[0].mxu0
  %v872 = vadd.f32 0.0, %v871
  %v873 = vpop.f32.mrb[0].mxu0
  %874 = vmatprep.mubr.bf16.mxu0 0
  %875 = vmatmul.mubr.bf16.gmra.mrb[0].mxu0 %v760
  %v876 = vpop.f32.mrb[0].mxu0
  %v877 = vadd.f32 0.0, %v876
  %v878 = vpop.f32.mrb[0].mxu0
  %v879 = vpop.f32.mrb[0].mxu0
  %v880 = vadd.f32 0.0, %v879
  %v881 = vpop.f32.mrb[0].mxu0
  %882 = vmatprep.mubr.bf16.mxu0 0
  %883 = vmatmul.mubr.bf16.gmra.mrb[0].mxu0 %v761
  %v884 = vpop.f32.mrb[0].mxu0
  %v885 = vadd.f32 0.0, %v884
  %v886 = vpop.f32.mrb[0].mxu0
  %v887 = vpop.f32.mrb[0].mxu0
  %v888 = vadd.f32 0.0, %v887
  %v889 = vpop.f32.mrb[0].mxu0
  %890 = vdwg.mxu0
  %v891 = vxor.u32 %v861, 2147483648
  %v892 = vxor.u32 %v864, 2147483648
  %v893 = vxor.u32 %v869, 2147483648
  %v894 = vxor.u32 %v872, 2147483648
  %v895 = vxor.u32 %v877, 2147483648
  %v896 = vxor.u32 %v880, 2147483648
  %v897 = vxor.u32 %v885, 2147483648
  %v898 = vxor.u32 %v888, 2147483648
  %v899 = vmul.f32 %v891, 1.442695
  %v900 = vpow.pop %v899
  %v901 = vmul.f32 %v892, 1.442695
  %v902 = vpow.pop %v901
  %v903 = vmul.f32 %v893, 1.442695
  %v904 = vpow.pop %v903
  %v905 = vmul.f32 %v894, 1.442695
  %v906 = vpow.pop %v905
  %v907 = vmul.f32 %v895, 1.442695
  %v908 = vpow.pop %v907
  %v909 = vmul.f32 %v896, 1.442695
  %v910 = vpow.pop %v909
  %v911 = vmul.f32 %v897, 1.442695
  %v912 = vpow.pop %v911
  %v913 = vmul.f32 %v898, 1.442695
  %v914 = vpow.pop %v913
  %v915 = vadd.f32 %v900, 1.0
  %v916 = vadd.f32 %v902, 1.0
  %v917 = vadd.f32 %v904, 1.0
  %v918 = vadd.f32 %v906, 1.0
  %v919 = vadd.f32 %v908, 1.0
  %v920 = vadd.f32 %v910, 1.0
  %v921 = vadd.f32 %v912, 1.0
  %v922 = vadd.f32 %v914, 1.0
  %v923 = vrcp.pop %v915
  %v924 = vmul.f32 1.0, %v923
  %v925 = vrcp.pop %v916
  %v926 = vmul.f32 1.0, %v925
  %v927 = vrcp.pop %v917
  %v928 = vmul.f32 1.0, %v927
  %v929 = vrcp.pop %v918
  %v930 = vmul.f32 1.0, %v929
  %v931 = vrcp.pop %v919
  %v932 = vmul.f32 1.0, %v931
  %v933 = vrcp.pop %v920
  %v934 = vmul.f32 1.0, %v933
  %v935 = vrcp.pop %v921
  %v936 = vmul.f32 1.0, %v935
  %v937 = vrcp.pop %v922
  %v938 = vmul.f32 1.0, %v937
  %v939 = vlaneseq
  %v940 = vand.u32 %v939, 127
  %vm941 = vcmp.lt.s32.totalorder %v940, 32
  %v942 = vsel %vm941, %v924, 0.0
  %v943 = vsel %vm941, %v926, 0.0
  %v944 = vsel %vm941, %v928, 0.0
  %v945 = vsel %vm941, %v930, 0.0
  %v946 = vsel %vm941, %v932, 0.0
  %v947 = vsel %vm941, %v934, 0.0
  %v948 = vsel %vm941, %v936, 0.0
  %v949 = vsel %vm941, %v938, 0.0
  %v950 = vpack.c.bf16 %v943, %v942
  %v951 = vpack.c.bf16 %v945, %v944
  %v952 = vpack.c.bf16 %v947, %v946
  %v953 = vpack.c.bf16 %v949, %v948
  %v954 = vld [vmem:[%s6] sm:$0xff]
  %v955 = vld [vmem:[%s6 + $0x8] sm:$0xff]
  %v956 = vld [vmem:[%s6 + $0x10] sm:$0xff]
  %v957 = vld [vmem:[%s6 + $0x18] sm:$0xff]
  %v958 = vld [vmem:[%s6 + $0x20] sm:$0xff]
  %v959 = vld [vmem:[%s6 + $0x28] sm:$0xff]
  %v960 = vld [vmem:[%s6 + $0x30] sm:$0xff]
  %v961 = vld [vmem:[%s6 + $0x38] sm:$0xff]
  %v962 = vld [vmem:[%s6 + $0x40] sm:$0xff]
  %v963 = vld [vmem:[%s6 + $0x48] sm:$0xff]
  %v964 = vld [vmem:[%s6 + $0x50] sm:$0xff]
  %v965 = vld [vmem:[%s6 + $0x58] sm:$0xff]
  %v966 = vld [vmem:[%s6 + $0x60] sm:$0xff]
  %v967 = vld [vmem:[%s6 + $0x68] sm:$0xff]
  %v968 = vld [vmem:[%s6 + $0x70] sm:$0xff]
  %v969 = vld [vmem:[%s6 + $0x78] sm:$0xff]
  %970 = vset.pattern.permute.xlu0 0
  %971 = vperm.xlu0 %970, %v954
  %v972 = vpop.permute.xlu0 %971
  %973 = vset.pattern.permute.xlu0 0
  %974 = vperm.xlu0 %973, %v955
  %v975 = vpop.permute.xlu0 %974
  %976 = vset.pattern.permute.xlu0 0
  %977 = vperm.xlu0 %976, %v956
  %v978 = vpop.permute.xlu0 %977
  %979 = vset.pattern.permute.xlu0 0
  %980 = vperm.xlu0 %979, %v957
  %v981 = vpop.permute.xlu0 %980
  %982 = vset.pattern.permute.xlu0 0
  %983 = vperm.xlu0 %982, %v958
  %v984 = vpop.permute.xlu0 %983
  %985 = vset.pattern.permute.xlu0 0
  %986 = vperm.xlu0 %985, %v959
  %v987 = vpop.permute.xlu0 %986
  %988 = vset.pattern.permute.xlu0 0
  %989 = vperm.xlu0 %988, %v960
  %v990 = vpop.permute.xlu0 %989
  %991 = vset.pattern.permute.xlu0 0
  %992 = vperm.xlu0 %991, %v961
  %v993 = vpop.permute.xlu0 %992
  %994 = vset.pattern.permute.xlu0 0
  %995 = vperm.xlu0 %994, %v962
  %v996 = vpop.permute.xlu0 %995
  %997 = vset.pattern.permute.xlu0 0
  %998 = vperm.xlu0 %997, %v963
  %v999 = vpop.permute.xlu0 %998
  %1000 = vset.pattern.permute.xlu0 0
  %1001 = vperm.xlu0 %1000, %v964
  %v1002 = vpop.permute.xlu0 %1001
  %1003 = vset.pattern.permute.xlu0 0
  %1004 = vperm.xlu0 %1003, %v965
  %v1005 = vpop.permute.xlu0 %1004
  %1006 = vset.pattern.permute.xlu0 0
  %1007 = vperm.xlu0 %1006, %v966
  %v1008 = vpop.permute.xlu0 %1007
  %1009 = vset.pattern.permute.xlu0 0
  %1010 = vperm.xlu0 %1009, %v967
  %v1011 = vpop.permute.xlu0 %1010
  %1012 = vset.pattern.permute.xlu0 0
  %1013 = vperm.xlu0 %1012, %v968
  %v1014 = vpop.permute.xlu0 %1013
  %1015 = vset.pattern.permute.xlu0 0
  %1016 = vperm.xlu0 %1015, %v969
  %v1017 = vpop.permute.xlu0 %1016
  %vm1018 = vcmp.eq.s32.totalorder %v940, %v972
  %vm1019 = vcmp.eq.s32.totalorder %v940, %v975
  %vm1020 = vcmp.eq.s32.totalorder %v940, %v978
  %vm1021 = vcmp.eq.s32.totalorder %v940, %v981
  %vm1022 = vcmp.eq.s32.totalorder %v940, %v984
  %vm1023 = vcmp.eq.s32.totalorder %v940, %v987
  %vm1024 = vcmp.eq.s32.totalorder %v940, %v990
  %vm1025 = vcmp.eq.s32.totalorder %v940, %v993
  %vm1026 = vcmp.eq.s32.totalorder %v940, %v996
  %vm1027 = vcmp.eq.s32.totalorder %v940, %v999
  %vm1028 = vcmp.eq.s32.totalorder %v940, %v1002
  %vm1029 = vcmp.eq.s32.totalorder %v940, %v1005
  %vm1030 = vcmp.eq.s32.totalorder %v940, %v1008
  %vm1031 = vcmp.eq.s32.totalorder %v940, %v1011
  %vm1032 = vcmp.eq.s32.totalorder %v940, %v1014
  %vm1033 = vcmp.eq.s32.totalorder %v940, %v1017
  %v1034 = vsel %vm1018, 1, 0
  %v1035 = vsel %vm1019, 1, 0
  %v1036 = vsel %vm1020, 1, 0
  %v1037 = vsel %vm1021, 1, 0
  %v1038 = vsel %vm1022, 1, 0
  %v1039 = vsel %vm1023, 1, 0
  %v1040 = vsel %vm1024, 1, 0
  %v1041 = vsel %vm1025, 1, 0
  %v1042 = vsel %vm1026, 1, 0
  %v1043 = vsel %vm1027, 1, 0
  %v1044 = vsel %vm1028, 1, 0
  %v1045 = vsel %vm1029, 1, 0
  %v1046 = vsel %vm1030, 1, 0
  %v1047 = vsel %vm1031, 1, 0
  %v1048 = vsel %vm1032, 1, 0
  %v1049 = vsel %vm1033, 1, 0
  %v1050 = vcvt.s32.f32 %v1034
  %v1051 = vcvt.s32.f32 %v1035
  %v1052 = vcvt.s32.f32 %v1036
  %v1053 = vcvt.s32.f32 %v1037
  %v1054 = vcvt.s32.f32 %v1038
  %v1055 = vcvt.s32.f32 %v1039
  %v1056 = vcvt.s32.f32 %v1040
  %v1057 = vcvt.s32.f32 %v1041
  %v1058 = vcvt.s32.f32 %v1042
  %v1059 = vcvt.s32.f32 %v1043
  %v1060 = vcvt.s32.f32 %v1044
  %v1061 = vcvt.s32.f32 %v1045
  %v1062 = vcvt.s32.f32 %v1046
  %v1063 = vcvt.s32.f32 %v1047
  %v1064 = vcvt.s32.f32 %v1048
  %v1065 = vcvt.s32.f32 %v1049
  %v1066 = vpack.c.bf16 %v1051, %v1050
  %v1067 = vpack.c.bf16 %v1053, %v1052
  %v1068 = vpack.c.bf16 %v1055, %v1054
  %v1069 = vpack.c.bf16 %v1057, %v1056
  %v1070 = vpack.c.bf16 %v1059, %v1058
  %v1071 = vpack.c.bf16 %v1061, %v1060
  %v1072 = vpack.c.bf16 %v1063, %v1062
  %v1073 = vpack.c.bf16 %v1065, %v1064
  %v1074 = vld [vmem:[%s7] sm:$0xff]
  %v1075 = vld [vmem:[%s7 + $0x8] sm:$0xff]
  %v1076 = vld [vmem:[%s7 + $0x10] sm:$0xff]
  %v1077 = vld [vmem:[%s7 + $0x18] sm:$0xff]
  %v1078 = vld [vmem:[%s7 + $0x20] sm:$0xff]
  %v1079 = vld [vmem:[%s7 + $0x28] sm:$0xff]
  %v1080 = vld [vmem:[%s7 + $0x30] sm:$0xff]
  %v1081 = vld [vmem:[%s7 + $0x38] sm:$0xff]
  %v1082 = vld [vmem:[%s7 + $0x40] sm:$0xff]
  %v1083 = vld [vmem:[%s7 + $0x48] sm:$0xff]
  %v1084 = vld [vmem:[%s7 + $0x50] sm:$0xff]
  %v1085 = vld [vmem:[%s7 + $0x58] sm:$0xff]
  %v1086 = vld [vmem:[%s7 + $0x60] sm:$0xff]
  %v1087 = vld [vmem:[%s7 + $0x68] sm:$0xff]
  %v1088 = vld [vmem:[%s7 + $0x70] sm:$0xff]
  %v1089 = vld [vmem:[%s7 + $0x78] sm:$0xff]
  %1090 = vset.pattern.permute.xlu0 0
  %1091 = vperm.xlu0 %1090, %v1074
  %v1092 = vpop.permute.xlu0 %1091
  %1093 = vset.pattern.permute.xlu0 0
  %1094 = vperm.xlu0 %1093, %v1075
  %v1095 = vpop.permute.xlu0 %1094
  %1096 = vset.pattern.permute.xlu0 0
  %1097 = vperm.xlu0 %1096, %v1076
  %v1098 = vpop.permute.xlu0 %1097
  %1099 = vset.pattern.permute.xlu0 0
  %1100 = vperm.xlu0 %1099, %v1077
  %v1101 = vpop.permute.xlu0 %1100
  %1102 = vset.pattern.permute.xlu0 0
  %1103 = vperm.xlu0 %1102, %v1078
  %v1104 = vpop.permute.xlu0 %1103
  %1105 = vset.pattern.permute.xlu0 0
  %1106 = vperm.xlu0 %1105, %v1079
  %v1107 = vpop.permute.xlu0 %1106
  %1108 = vset.pattern.permute.xlu0 0
  %1109 = vperm.xlu0 %1108, %v1080
  %v1110 = vpop.permute.xlu0 %1109
  %1111 = vset.pattern.permute.xlu0 0
  %1112 = vperm.xlu0 %1111, %v1081
  %v1113 = vpop.permute.xlu0 %1112
  %1114 = vset.pattern.permute.xlu0 0
  %1115 = vperm.xlu0 %1114, %v1082
  %v1116 = vpop.permute.xlu0 %1115
  %1117 = vset.pattern.permute.xlu0 0
  %1118 = vperm.xlu0 %1117, %v1083
  %v1119 = vpop.permute.xlu0 %1118
  %1120 = vset.pattern.permute.xlu0 0
  %1121 = vperm.xlu0 %1120, %v1084
  %v1122 = vpop.permute.xlu0 %1121
  %1123 = vset.pattern.permute.xlu0 0
  %1124 = vperm.xlu0 %1123, %v1085
  %v1125 = vpop.permute.xlu0 %1124
  %1126 = vset.pattern.permute.xlu0 0
  %1127 = vperm.xlu0 %1126, %v1086
  %v1128 = vpop.permute.xlu0 %1127
  %1129 = vset.pattern.permute.xlu0 0
  %1130 = vperm.xlu0 %1129, %v1087
  %v1131 = vpop.permute.xlu0 %1130
  %1132 = vset.pattern.permute.xlu0 0
  %1133 = vperm.xlu0 %1132, %v1088
  %v1134 = vpop.permute.xlu0 %1133
  %1135 = vset.pattern.permute.xlu0 0
  %1136 = vperm.xlu0 %1135, %v1089
  %v1137 = vpop.permute.xlu0 %1136
  %vm1138 = vcmp.eq.s32.totalorder %v940, %v1092
  %vm1139 = vcmp.eq.s32.totalorder %v940, %v1095
  %vm1140 = vcmp.eq.s32.totalorder %v940, %v1098
  %vm1141 = vcmp.eq.s32.totalorder %v940, %v1101
  %vm1142 = vcmp.eq.s32.totalorder %v940, %v1104
  %vm1143 = vcmp.eq.s32.totalorder %v940, %v1107
  %vm1144 = vcmp.eq.s32.totalorder %v940, %v1110
  %vm1145 = vcmp.eq.s32.totalorder %v940, %v1113
  %vm1146 = vcmp.eq.s32.totalorder %v940, %v1116
  %vm1147 = vcmp.eq.s32.totalorder %v940, %v1119
  %vm1148 = vcmp.eq.s32.totalorder %v940, %v1122
  %vm1149 = vcmp.eq.s32.totalorder %v940, %v1125
  %vm1150 = vcmp.eq.s32.totalorder %v940, %v1128
  %vm1151 = vcmp.eq.s32.totalorder %v940, %v1131
  %vm1152 = vcmp.eq.s32.totalorder %v940, %v1134
  %vm1153 = vcmp.eq.s32.totalorder %v940, %v1137
  %v1154 = vsel %vm1138, 1, 0
  %v1155 = vsel %vm1139, 1, 0
  %v1156 = vsel %vm1140, 1, 0
  %v1157 = vsel %vm1141, 1, 0
  %v1158 = vsel %vm1142, 1, 0
  %v1159 = vsel %vm1143, 1, 0
  %v1160 = vsel %vm1144, 1, 0
  %v1161 = vsel %vm1145, 1, 0
  %v1162 = vsel %vm1146, 1, 0
  %v1163 = vsel %vm1147, 1, 0
  %v1164 = vsel %vm1148, 1, 0
  %v1165 = vsel %vm1149, 1, 0
  %v1166 = vsel %vm1150, 1, 0
  %v1167 = vsel %vm1151, 1, 0
  %v1168 = vsel %vm1152, 1, 0
  %v1169 = vsel %vm1153, 1, 0
  %v1170 = vcvt.s32.f32 %v1154
  %v1171 = vcvt.s32.f32 %v1155
  %v1172 = vcvt.s32.f32 %v1156
  %v1173 = vcvt.s32.f32 %v1157
  %v1174 = vcvt.s32.f32 %v1158
  %v1175 = vcvt.s32.f32 %v1159
  %v1176 = vcvt.s32.f32 %v1160
  %v1177 = vcvt.s32.f32 %v1161
  %v1178 = vcvt.s32.f32 %v1162
  %v1179 = vcvt.s32.f32 %v1163
  %v1180 = vcvt.s32.f32 %v1164
  %v1181 = vcvt.s32.f32 %v1165
  %v1182 = vcvt.s32.f32 %v1166
  %v1183 = vcvt.s32.f32 %v1167
  %v1184 = vcvt.s32.f32 %v1168
  %v1185 = vcvt.s32.f32 %v1169
  %v1186 = vpack.c.bf16 %v1171, %v1170
  %v1187 = vpack.c.bf16 %v1173, %v1172
  %v1188 = vpack.c.bf16 %v1175, %v1174
  %v1189 = vpack.c.bf16 %v1177, %v1176
  %v1190 = vpack.c.bf16 %v1179, %v1178
  %v1191 = vpack.c.bf16 %v1181, %v1180
  %v1192 = vpack.c.bf16 %v1183, %v1182
  %v1193 = vpack.c.bf16 %v1185, %v1184
  %v1195 = vsel %vm92, %v1066, 0
  %v1198 = vsel %vm92, %v1067, 0
  %v1201 = vsel %vm92, %v1068, 0
  %v1204 = vsel %vm92, %v1069, 0
  %v1207 = vsel %vm92, %v1070, 0
  %v1210 = vsel %vm92, %v1071, 0
  %v1213 = vsel %vm92, %v1072, 0
  %v1216 = vsel %vm92, %v1073, 0
  %1218 = vmatprep.subr.bf16.mxu0 0
  %1219 = vmatpush1.bf16.msra.mxu0 %v950
  %1220 = vmatprep.subr.bf16.mxu0 0
  %1221 = vmatpush1.bf16.msra.mxu0 %v951
  %1222 = vmatprep.subr.bf16.mxu0 0
  %1223 = vmatpush1.bf16.msra.mxu0 %v952
  %1224 = vmatprep.subr.bf16.mxu0 0
  %1225 = vmatpush1.bf16.msra.mxu0 %v953
  %1226 = vmatprep.subr.bf16.mxu0 0
  %1227 = vmatpush1.bf16.msra.mxu0 0
  %1228 = vmatprep.subr.bf16.mxu0 0
  %1229 = vmatpush1.bf16.msra.mxu0 0
  %1230 = vmatprep.subr.bf16.mxu0 0
  %1231 = vmatpush1.bf16.msra.mxu0 0
  %1232 = vmatprep.subr.bf16.mxu0 0
  %1233 = vmatpush1.bf16.msra.mxu0 0
  %1234 = vmatprep.subr.bf16.mxu0 0
  %1235 = vmatpush1.bf16.msra.mxu0 0
  %1236 = vmatprep.subr.bf16.mxu0 0
  %1237 = vmatpush1.bf16.msra.mxu0 0
  %1238 = vmatprep.subr.bf16.mxu0 0
  %1239 = vmatpush1.bf16.msra.mxu0 0
  %1240 = vmatprep.subr.bf16.mxu0 0
  %1241 = vmatpush1.bf16.msra.mxu0 0
  %1242 = vmatprep.subr.bf16.mxu0 0
  %1243 = vmatpush1.bf16.msra.mxu0 0
  %1244 = vmatprep.subr.bf16.mxu0 0
  %1245 = vmatpush1.bf16.msra.mxu0 0
  %1246 = vmatprep.subr.bf16.mxu0 0
  %1247 = vmatpush1.bf16.msra.mxu0 0
  %1248 = vmatprep.subr.bf16.mxu0 0
  %1249 = vmatpush1.bf16.msra.mxu0 0
  %1250 = vmatprep.mubr.bf16.mxu0 0
  %1251 = vmatmul.mubr.bf16.gmra.mrb[0].mxu0 %v1195
  %v1252 = vpop.f32.mrb[0].mxu0
  %v1253 = vadd.f32 0.0, %v1252
  %v1254 = vpop.f32.mrb[0].mxu0
  %v1255 = vpop.f32.mrb[0].mxu0
  %v1256 = vadd.f32 0.0, %v1255
  %v1257 = vpop.f32.mrb[0].mxu0
  %1258 = vmatprep.mubr.bf16.mxu0 0
  %1259 = vmatmul.mubr.bf16.gmra.mrb[0].mxu0 %v1198
  %v1260 = vpop.f32.mrb[0].mxu0
  %v1261 = vadd.f32 0.0, %v1260
  %v1262 = vpop.f32.mrb[0].mxu0
  %v1263 = vpop.f32.mrb[0].mxu0
  %v1264 = vadd.f32 0.0, %v1263
  %v1265 = vpop.f32.mrb[0].mxu0
  %1266 = vmatprep.mubr.bf16.mxu0 0
  %1267 = vmatmul.mubr.bf16.gmra.mrb[0].mxu0 %v1201
  %v1268 = vpop.f32.mrb[0].mxu0
  %v1269 = vadd.f32 0.0, %v1268
  %v1270 = vpop.f32.mrb[0].mxu0
  %v1271 = vpop.f32.mrb[0].mxu0
  %v1272 = vadd.f32 0.0, %v1271
  %v1273 = vpop.f32.mrb[0].mxu0
  %1274 = vmatprep.mubr.bf16.mxu0 0
  %1275 = vmatmul.mubr.bf16.gmra.mrb[0].mxu0 %v1204
  %v1276 = vpop.f32.mrb[0].mxu0
  %v1277 = vadd.f32 0.0, %v1276
  %v1278 = vpop.f32.mrb[0].mxu0
  %v1279 = vpop.f32.mrb[0].mxu0
  %v1280 = vadd.f32 0.0, %v1279
  %v1281 = vpop.f32.mrb[0].mxu0
  %1282 = vmatprep.mubr.bf16.mxu0 0
  %1283 = vmatmul.mubr.bf16.gmra.mrb[0].mxu0 %v1207
  %v1284 = vpop.f32.mrb[0].mxu0
  %v1285 = vadd.f32 0.0, %v1284
  %v1286 = vpop.f32.mrb[0].mxu0
  %v1287 = vpop.f32.mrb[0].mxu0
  %v1288 = vadd.f32 0.0, %v1287
  %v1289 = vpop.f32.mrb[0].mxu0
  %1290 = vmatprep.mubr.bf16.mxu0 0
  %1291 = vmatmul.mubr.bf16.gmra.mrb[0].mxu0 %v1210
  %v1292 = vpop.f32.mrb[0].mxu0
  %v1293 = vadd.f32 0.0, %v1292
  %v1294 = vpop.f32.mrb[0].mxu0
  %v1295 = vpop.f32.mrb[0].mxu0
  %v1296 = vadd.f32 0.0, %v1295
  %v1297 = vpop.f32.mrb[0].mxu0
  %1298 = vmatprep.mubr.bf16.mxu0 0
  %1299 = vmatmul.mubr.bf16.gmra.mrb[0].mxu0 %v1213
  %v1300 = vpop.f32.mrb[0].mxu0
  %v1301 = vadd.f32 0.0, %v1300
  %v1302 = vpop.f32.mrb[0].mxu0
  %v1303 = vpop.f32.mrb[0].mxu0
  %v1304 = vadd.f32 0.0, %v1303
  %v1305 = vpop.f32.mrb[0].mxu0
  %1306 = vmatprep.mubr.bf16.mxu0 0
  %1307 = vmatmul.mubr.bf16.gmra.mrb[0].mxu0 %v1216
  %v1308 = vpop.f32.mrb[0].mxu0
  %v1309 = vadd.f32 0.0, %v1308
  %v1310 = vpop.f32.mrb[0].mxu0
  %v1311 = vpop.f32.mrb[0].mxu0
  %v1312 = vadd.f32 0.0, %v1311
  %v1313 = vpop.f32.mrb[0].mxu0
  %1314 = vdwg.mxu0
  %v1316 = vsel %vm92, %v1186, 0
  %v1319 = vsel %vm92, %v1187, 0
  %v1322 = vsel %vm92, %v1188, 0
  %v1325 = vsel %vm92, %v1189, 0
  %v1328 = vsel %vm92, %v1190, 0
  %v1331 = vsel %vm92, %v1191, 0
  %v1334 = vsel %vm92, %v1192, 0
  %v1337 = vsel %vm92, %v1193, 0
  %1339 = vmatprep.subr.bf16.mxu0 0
  %1340 = vmatpush1.bf16.msra.mxu0 %v950
  %1341 = vmatprep.subr.bf16.mxu0 0
  %1342 = vmatpush1.bf16.msra.mxu0 %v951
  %1343 = vmatprep.subr.bf16.mxu0 0
  %1344 = vmatpush1.bf16.msra.mxu0 %v952
  %1345 = vmatprep.subr.bf16.mxu0 0
  %1346 = vmatpush1.bf16.msra.mxu0 %v953
  %1347 = vmatprep.subr.bf16.mxu0 0
  %1348 = vmatpush1.bf16.msra.mxu0 0
  %1349 = vmatprep.subr.bf16.mxu0 0
  %1350 = vmatpush1.bf16.msra.mxu0 0
  %1351 = vmatprep.subr.bf16.mxu0 0
  %1352 = vmatpush1.bf16.msra.mxu0 0
  %1353 = vmatprep.subr.bf16.mxu0 0
  %1354 = vmatpush1.bf16.msra.mxu0 0
  %1355 = vmatprep.subr.bf16.mxu0 0
  %1356 = vmatpush1.bf16.msra.mxu0 0
  %1357 = vmatprep.subr.bf16.mxu0 0
  %1358 = vmatpush1.bf16.msra.mxu0 0
  %1359 = vmatprep.subr.bf16.mxu0 0
  %1360 = vmatpush1.bf16.msra.mxu0 0
  %1361 = vmatprep.subr.bf16.mxu0 0
  %1362 = vmatpush1.bf16.msra.mxu0 0
  %1363 = vmatprep.subr.bf16.mxu0 0
  %1364 = vmatpush1.bf16.msra.mxu0 0
  %1365 = vmatprep.subr.bf16.mxu0 0
  %1366 = vmatpush1.bf16.msra.mxu0 0
  %1367 = vmatprep.subr.bf16.mxu0 0
  %1368 = vmatpush1.bf16.msra.mxu0 0
  %1369 = vmatprep.subr.bf16.mxu0 0
  %1370 = vmatpush1.bf16.msra.mxu0 0
  %1371 = vmatprep.mubr.bf16.mxu0 0
  %1372 = vmatmul.mubr.bf16.gmra.mrb[0].mxu0 %v1316
  %v1373 = vpop.f32.mrb[0].mxu0
  %v1374 = vadd.f32 0.0, %v1373
  %v1375 = vpop.f32.mrb[0].mxu0
  %v1376 = vpop.f32.mrb[0].mxu0
  %v1377 = vadd.f32 0.0, %v1376
  %v1378 = vpop.f32.mrb[0].mxu0
  %1379 = vmatprep.mubr.bf16.mxu0 0
  %1380 = vmatmul.mubr.bf16.gmra.mrb[0].mxu0 %v1319
  %v1381 = vpop.f32.mrb[0].mxu0
  %v1382 = vadd.f32 0.0, %v1381
  %v1383 = vpop.f32.mrb[0].mxu0
  %v1384 = vpop.f32.mrb[0].mxu0
  %v1385 = vadd.f32 0.0, %v1384
  %v1386 = vpop.f32.mrb[0].mxu0
  %1387 = vmatprep.mubr.bf16.mxu0 0
  %1388 = vmatmul.mubr.bf16.gmra.mrb[0].mxu0 %v1322
  %v1389 = vpop.f32.mrb[0].mxu0
  %v1390 = vadd.f32 0.0, %v1389
  %v1391 = vpop.f32.mrb[0].mxu0
  %v1392 = vpop.f32.mrb[0].mxu0
  %v1393 = vadd.f32 0.0, %v1392
  %v1394 = vpop.f32.mrb[0].mxu0
  %1395 = vmatprep.mubr.bf16.mxu0 0
  %1396 = vmatmul.mubr.bf16.gmra.mrb[0].mxu0 %v1325
  %v1397 = vpop.f32.mrb[0].mxu0
  %v1398 = vadd.f32 0.0, %v1397
  %v1399 = vpop.f32.mrb[0].mxu0
  %v1400 = vpop.f32.mrb[0].mxu0
  %v1401 = vadd.f32 0.0, %v1400
  %v1402 = vpop.f32.mrb[0].mxu0
  %1403 = vmatprep.mubr.bf16.mxu0 0
  %1404 = vmatmul.mubr.bf16.gmra.mrb[0].mxu0 %v1328
  %v1405 = vpop.f32.mrb[0].mxu0
  %v1406 = vadd.f32 0.0, %v1405
  %v1407 = vpop.f32.mrb[0].mxu0
  %v1408 = vpop.f32.mrb[0].mxu0
  %v1409 = vadd.f32 0.0, %v1408
  %v1410 = vpop.f32.mrb[0].mxu0
  %1411 = vmatprep.mubr.bf16.mxu0 0
  %1412 = vmatmul.mubr.bf16.gmra.mrb[0].mxu0 %v1331
  %v1413 = vpop.f32.mrb[0].mxu0
  %v1414 = vadd.f32 0.0, %v1413
  %v1415 = vpop.f32.mrb[0].mxu0
  %v1416 = vpop.f32.mrb[0].mxu0
  %v1417 = vadd.f32 0.0, %v1416
  %v1418 = vpop.f32.mrb[0].mxu0
  %1419 = vmatprep.mubr.bf16.mxu0 0
  %1420 = vmatmul.mubr.bf16.gmra.mrb[0].mxu0 %v1334
  %v1421 = vpop.f32.mrb[0].mxu0
  %v1422 = vadd.f32 0.0, %v1421
  %v1423 = vpop.f32.mrb[0].mxu0
  %v1424 = vpop.f32.mrb[0].mxu0
  %v1425 = vadd.f32 0.0, %v1424
  %v1426 = vpop.f32.mrb[0].mxu0
  %1427 = vmatprep.mubr.bf16.mxu0 0
  %1428 = vmatmul.mubr.bf16.gmra.mrb[0].mxu0 %v1337
  %v1429 = vpop.f32.mrb[0].mxu0
  %v1430 = vadd.f32 0.0, %v1429
  %v1431 = vpop.f32.mrb[0].mxu0
  %v1432 = vpop.f32.mrb[0].mxu0
  %v1433 = vadd.f32 0.0, %v1432
  %v1434 = vpop.f32.mrb[0].mxu0
  %1435 = vdwg.mxu0
  %v1436 = vmul.f32 %v1253, %v1374
  %v1437 = vmul.f32 %v1256, %v1377
  %v1438 = vmul.f32 %v1261, %v1382
  %v1439 = vmul.f32 %v1264, %v1385
  %v1440 = vmul.f32 %v1269, %v1390
  %v1441 = vmul.f32 %v1272, %v1393
  %v1442 = vmul.f32 %v1277, %v1398
  %v1443 = vmul.f32 %v1280, %v1401
  %v1444 = vmul.f32 %v1285, %v1406
  %v1445 = vmul.f32 %v1288, %v1409
  %v1446 = vmul.f32 %v1293, %v1414
  %v1447 = vmul.f32 %v1296, %v1417
  %v1448 = vmul.f32 %v1301, %v1422
  %v1449 = vmul.f32 %v1304, %v1425
  %v1450 = vmul.f32 %v1309, %v1430
  %v1451 = vmul.f32 %v1312, %v1433
  %1452 = vadd.xlane.f32.xlu0 %v1436
  %v1453 = vpop.xlane.xlu0 %1452
  %1454 = vadd.xlane.f32.xlu0 %v1437
  %v1455 = vpop.xlane.xlu0 %1454
  %1456 = vadd.xlane.f32.xlu0 %v1438
  %v1457 = vpop.xlane.xlu0 %1456
  %1458 = vadd.xlane.f32.xlu0 %v1439
  %v1459 = vpop.xlane.xlu0 %1458
  %1460 = vadd.xlane.f32.xlu0 %v1440
  %v1461 = vpop.xlane.xlu0 %1460
  %1462 = vadd.xlane.f32.xlu0 %v1441
  %v1463 = vpop.xlane.xlu0 %1462
  %1464 = vadd.xlane.f32.xlu0 %v1442
  %v1465 = vpop.xlane.xlu0 %1464
  %1466 = vadd.xlane.f32.xlu0 %v1443
  %v1467 = vpop.xlane.xlu0 %1466
  %1468 = vadd.xlane.f32.xlu0 %v1444
  %v1469 = vpop.xlane.xlu0 %1468
  %1470 = vadd.xlane.f32.xlu0 %v1445
  %v1471 = vpop.xlane.xlu0 %1470
  %1472 = vadd.xlane.f32.xlu0 %v1446
  %v1473 = vpop.xlane.xlu0 %1472
  %1474 = vadd.xlane.f32.xlu0 %v1447
  %v1475 = vpop.xlane.xlu0 %1474
  %1476 = vadd.xlane.f32.xlu0 %v1448
  %v1477 = vpop.xlane.xlu0 %1476
  %1478 = vadd.xlane.f32.xlu0 %v1449
  %v1479 = vpop.xlane.xlu0 %1478
  %1480 = vadd.xlane.f32.xlu0 %v1450
  %v1481 = vpop.xlane.xlu0 %1480
  %1482 = vadd.xlane.f32.xlu0 %v1451
  %v1483 = vpop.xlane.xlu0 %1482
  %vm1484 = vcmask 7168
  %1485 = vst.msk [vmem:[%s9] sm:$0xff] %vm1484, %v1453
  %1486 = vst.msk [vmem:[%s9 + $0x8] sm:$0xff] %vm1484, %v1455
  %1487 = vst.msk [vmem:[%s9 + $0x10] sm:$0xff] %vm1484, %v1457
  %1488 = vst.msk [vmem:[%s9 + $0x18] sm:$0xff] %vm1484, %v1459
  %1489 = vst.msk [vmem:[%s9 + $0x20] sm:$0xff] %vm1484, %v1461
  %1490 = vst.msk [vmem:[%s9 + $0x28] sm:$0xff] %vm1484, %v1463
  %1491 = vst.msk [vmem:[%s9 + $0x30] sm:$0xff] %vm1484, %v1465
  %1492 = vst.msk [vmem:[%s9 + $0x38] sm:$0xff] %vm1484, %v1467
  %1493 = vst.msk [vmem:[%s9 + $0x40] sm:$0xff] %vm1484, %v1469
  %1494 = vst.msk [vmem:[%s9 + $0x48] sm:$0xff] %vm1484, %v1471
  %1495 = vst.msk [vmem:[%s9 + $0x50] sm:$0xff] %vm1484, %v1473
  %1496 = vst.msk [vmem:[%s9 + $0x58] sm:$0xff] %vm1484, %v1475
  %1497 = vst.msk [vmem:[%s9 + $0x60] sm:$0xff] %vm1484, %v1477
  %1498 = vst.msk [vmem:[%s9 + $0x68] sm:$0xff] %vm1484, %v1479
  %1499 = vst.msk [vmem:[%s9 + $0x70] sm:$0xff] %vm1484, %v1481
  %1500 = vst.msk [vmem:[%s9 + $0x78] sm:$0xff] %vm1484, %v1483
  // Predicated region
  $region34: #{forward.1} parent=0 // pred_check
    _
  $region35: #{forward.1} parent=0 // pred_check_branch
    %1502 = sbr.rel (0) target = $region37
  $region36: #{forward.1} parent=0 // pred_region
    _
  $region37: #{forward.1} parent=0 // pred_fallthru
    _
  // Predicated region
  $region38: #{forward.1} parent=0 // pred_check
    _
  $region39: #{forward.1} parent=0 // pred_check_branch
    %1504 = sbr.rel (0) target = $region41
  $region40: #{forward.1} parent=0 // pred_region
    _
  $region41: #{forward.1} parent=0 // pred_fallthru
    _
  // Predicated region
  $region42: #{forward.1} parent=0 // pred_check
    _
  $region43: #{forward.1} parent=0 // pred_check_branch
    %1506 = sbr.rel (0) target = $region45
  $region44: #{forward.1} parent=0 // pred_region
    _
  $region45: #{forward.1} parent=0 // pred_fallthru
    _
  // Predicated region
  $region46: #{forward.1} parent=0 // pred_check
    _
  $region47: #{forward.1} parent=0 // pred_check_branch
    %1508 = sbr.rel (0) target = $region49
  $region48: #{forward.1} parent=0 // pred_region
    _
  $region49: #{forward.1} parent=0 // pred_fallthru
    _

</llo_original>
